<compile_context>
chip_gen: v6e
topology: v6e:2x2x1
jax: 0.10.0
libtpu: 0.0.40
codegen_flags: <defaults>
</compile_context>

<pallas_src>
import math
import functools

import jax
import jax.numpy as jnp
from jax import lax
from jax.experimental import pallas as pl
from jax.experimental.pallas import tpu as pltpu


def _softplus(x):
    # numerically stable softplus (matches torch.nn.functional.softplus)
    return jnp.maximum(x, 0.0) + jnp.log1p(jnp.exp(-jnp.abs(x)))


def _silu(x):
    return x * jax.nn.sigmoid(x)


def _mamba_kernel(h_ref, w_in_x_ref, w_in_z_ref, conv_w_ref, conv_b_ref,
                  w_xf_ref, w_dt_ref, dt_b_ref, neg_aT_ref, d_ref, w_out_ref,
                  out_ref,
                  xext_ref, delta_ref, xc_ref, b_ref, c_ref, y_ref, ssm_ref,
                  *, l_tile, d_inner, d_state, d_conv, dt_rank, seg, chunk):
    f32 = jnp.float32
    pad = 8                                   # sublane-aligned room for conv carry
    l_idx = pl.program_id(1)

    # ---- init persistent carries at the start of each sequence -------------
    @pl.when(l_idx == 0)
    def _():
        xext_ref[pl.ds(0, pad), :] = jnp.zeros((pad, d_inner), f32)
        ssm_ref[...] = jnp.zeros((d_state, d_inner), f32)

    # ---- carry conv state: last d_conv-1 pre-conv rows of previous tile ----
    if d_conv > 1:
        @pl.when(l_idx > 0)
        def _():
            xext_ref[pl.ds(pad - (d_conv - 1), d_conv - 1), :] = (
                xext_ref[pl.ds(pad + l_tile - (d_conv - 1), d_conv - 1), :])

    # ---- in_proj "x" half (MXU) --------------------------------------------
    x = jnp.dot(h_ref[...], w_in_x_ref[...],
                preferred_element_type=f32)                  # (Lt, d_inner)
    xext_ref[pl.ds(pad, l_tile), :] = x

    # ---- depthwise causal conv1d + bias + SiLU (no masks / selects) --------
    acc = jnp.zeros((l_tile, d_inner), f32)
    for k in range(d_conv):
        acc = acc + (xext_ref[pl.ds(pad - (d_conv - 1) + k, l_tile), :]
                     * conv_w_ref[pl.ds(k, 1), :])
    xc = _silu(acc + conv_b_ref[...])                        # (Lt, d_inner) f32
    xc_ref[...] = xc

    # ---- fused x_proj: ONE MXU pass -> dt|B|C at lane offsets 0/seg/2*seg --
    xdbc = jnp.dot(xc.astype(w_xf_ref.dtype), w_xf_ref[...],
                   preferred_element_type=f32)               # (Lt, 3*seg)
    dt_low = xdbc[:, 0:dt_rank]                              # (Lt, r)
    b_ref[...] = xdbc[:, seg:seg + d_state]                  # (Lt, n)
    c_ref[...] = xdbc[:, 2 * seg:2 * seg + d_state]          # (Lt, n)

    # ---- dt_proj (MXU) + softplus -------------------------------------------
    dt = jnp.dot(dt_low.astype(w_dt_ref.dtype), w_dt_ref[...],
                 preferred_element_type=f32)                 # (Lt, d_inner)
    delta_ref[...] = _softplus(dt + dt_b_ref[...])

    neg_a_b = neg_aT_ref[...][None, :, :]                    # (1, n, d) hoisted

    # ---- chunked selective scan; SSM state carried across chunks & L-tiles -
    def chunk_body(ci, h_state):
        t0 = pl.multiple_of(ci * chunk, chunk)
        delta_c = delta_ref[pl.ds(t0, chunk), :]             # (c, d)
        du_c = delta_c * xc_ref[pl.ds(t0, chunk), :]         # (c, d)
        bm_c = b_ref[pl.ds(t0, chunk), :]                    # (c, n)
        cT_c = c_ref[pl.ds(t0, chunk), :].T                  # (n, c)
        dA_c = jnp.exp(delta_c[:, None, :] * neg_a_b)        # (c, n, d) batched EUP
        dBu_c = bm_c[:, :, None] * du_c[:, None, :]          # (c, n, d) batched
        for s in range(chunk):
            h_state = dA_c[s] * h_state + dBu_c[s]           # (n, d)
            y_row = jnp.sum(cT_c[:, s:s + 1] * h_state, axis=0, keepdims=True)
            y_ref[pl.ds(t0 + s, 1), :] = y_row               # direct row store
        return h_state

    h_final = lax.fori_loop(0, l_tile // chunk, chunk_body, ssm_ref[...])
    ssm_ref[...] = h_final

    # ---- epilogue: D*u skip, z-gating (z computed late), out_proj ----------
    z = jnp.dot(h_ref[...], w_in_z_ref[...], preferred_element_type=f32)
    y = (y_ref[...] + d_ref[...] * xc_ref[...]) * _silu(z)
    out_ref[...] = jnp.dot(y.astype(w_out_ref.dtype), w_out_ref[...],
                           preferred_element_type=f32).astype(out_ref.dtype)


def mamba_pallas(hidden, params, *, d_state, d_conv, dt_rank,
                 compute_dtype=jnp.float32, l_tile=None, chunk=None,
                 vmem_limit_bytes=None):
    B, L, D = hidden.shape
    f32 = jnp.float32
    cdt = compute_dtype

    w_in = params['w_in']                                    # (2*d_inner, D)
    d_inner = w_in.shape[0] // 2
    w_in_x = w_in[:d_inner, :].T.astype(cdt)                 # (D, d_inner)
    w_in_z = w_in[d_inner:, :].T.astype(cdt)                 # (D, d_inner)
    conv_w = params['conv_w'].reshape(d_inner, d_conv).T.astype(f32)  # (d_conv, d_inner)
    conv_b = params['conv_b'].reshape(1, d_inner).astype(f32)

    # fused, lane-aligned x_proj weight: [dt | B | C] at lanes 0 / seg / 2*seg
    seg = 128 * max(1, pl.cdiv(max(dt_rank, d_state), 128))
    w_x = params['w_x']                                      # (r + 2n, d_inner)
    w_xf = jnp.zeros((d_inner, 3 * seg), cdt)
    w_xf = w_xf.at[:, 0:dt_rank].set(w_x[:dt_rank, :].T.astype(cdt))
    w_xf = w_xf.at[:, seg:seg + d_state].set(
        w_x[dt_rank:dt_rank + d_state, :].T.astype(cdt))
    w_xf = w_xf.at[:, 2 * seg:2 * seg + d_state].set(
        w_x[dt_rank + d_state:, :].T.astype(cdt))

    w_dt = params['w_dt'].T.astype(cdt)                      # (r, d_inner)
    dt_b = params['dt_b'].reshape(1, d_inner).astype(f32)
    neg_aT = (-jnp.exp(params['A_log'].astype(f32))).T       # (n, d_inner)
    d_par = params['D'].reshape(1, d_inner).astype(f32)
    w_out = params['w_out'].T.astype(cdt)                    # (d_inner, D)

    if l_tile is None:
        l_tile = next(t for t in (128, 64, 32, 16, 8, L) if L % t == 0)
    assert L % l_tile == 0, "sequence length must be divisible by l_tile"
    if chunk is None:
        chunk = next(c for c in (16, 8, 4, 2, 1) if l_tile % c == 0)
    assert l_tile % chunk == 0, "l_tile must be divisible by chunk"
    assert d_conv - 1 <= 8, "conv carry region assumes d_conv <= 9"

    hidden_c = hidden.astype(cdt)

    kernel = functools.partial(_mamba_kernel, l_tile=l_tile, d_inner=d_inner,
                               d_state=d_state, d_conv=d_conv, dt_rank=dt_rank,
                               seg=seg, chunk=chunk)

    def full_spec(arr):
        nd = arr.ndim
        return pl.BlockSpec(arr.shape, lambda b, l, _nd=nd: (0,) * _nd)

    return pl.pallas_call(
        kernel,
        out_shape=jax.ShapeDtypeStruct((B, L, D), hidden.dtype),
        grid_spec=pltpu.PrefetchScalarGridSpec(
            num_scalar_prefetch=0,
            grid=(B, L // l_tile),
            in_specs=[
                pl.BlockSpec((None, l_tile, D), lambda b, l: (b, l, 0)),
                full_spec(w_in_x), full_spec(w_in_z),
                full_spec(conv_w), full_spec(conv_b),
                full_spec(w_xf), full_spec(w_dt), full_spec(dt_b),
                full_spec(neg_aT), full_spec(d_par), full_spec(w_out),
            ],
            out_specs=pl.BlockSpec((None, l_tile, D), lambda b, l: (b, l, 0)),
            scratch_shapes=[
                pltpu.VMEM((8 + l_tile, d_inner), f32),   # conv staging + carry
                pltpu.VMEM((l_tile, d_inner), f32),       # delta
                pltpu.VMEM((l_tile, d_inner), f32),       # xc (post-conv SiLU)
                pltpu.VMEM((l_tile, d_state), f32),       # B
                pltpu.VMEM((l_tile, d_state), f32),       # C
                pltpu.VMEM((l_tile, d_inner), f32),       # y (scan output)
                pltpu.VMEM((d_state, d_inner), f32),      # SSM state carry
            ]),
        compiler_params=pltpu.CompilerParams(
            dimension_semantics=("parallel", "arbitrary"),
            vmem_limit_bytes=vmem_limit_bytes),
    )(hidden_c, w_in_x, w_in_z, conv_w, conv_b, w_xf, w_dt, dt_b,
      neg_aT, d_par, w_out)


# ---------------- deterministic parameter init (mirrors Mamba_.__init__) -----
def init_params(key, d_model, d_state=16, d_conv=4, expand=2,
                dt_min=0.001, dt_max=0.1, dt_init_floor=1e-4):
    d_inner = int(expand * d_model)
    dt_rank = math.ceil(d_model / 16)
    ks = jax.random.split(key, 7)
    w_in = jax.random.uniform(ks[0], (2 * d_inner, d_model), jnp.float32,
                              -1.0, 1.0) / math.sqrt(d_model)
    conv_w = jax.random.uniform(ks[1], (d_inner, 1, d_conv), jnp.float32,
                                -1.0, 1.0) / math.sqrt(d_conv)
    conv_b = jax.random.uniform(ks[2], (d_inner,), jnp.float32,
                                -1.0, 1.0) / math.sqrt(d_conv)
    w_x = jax.random.uniform(ks[3], (dt_rank + 2 * d_state, d_inner),
                             jnp.float32, -1.0, 1.0) / math.sqrt(d_inner)
    dt_init_std = dt_rank ** -0.5
    w_dt = jax.random.uniform(ks[4], (d_inner, dt_rank), jnp.float32,
                              -dt_init_std, dt_init_std)
    dt = jnp.exp(jax.random.uniform(ks[5], (d_inner,), jnp.float32)
                 * (math.log(dt_max) - math.log(dt_min)) + math.log(dt_min))
    dt = jnp.maximum(dt, dt_init_floor)
    dt_b = dt + jnp.log(-jnp.expm1(-dt))            # inv_dt (dt_proj.bias)
    A = jnp.tile(jnp.arange(1, d_state + 1, dtype=jnp.float32)[None, :],
                 (d_inner, 1))
    A_log = jnp.log(A)
    D_par = jnp.ones((d_inner,), jnp.float32)
    w_out = jax.random.uniform(ks[6], (d_model, d_inner), jnp.float32,
                               -1.0, 1.0) / math.sqrt(d_inner)
    return dict(w_in=w_in, conv_w=conv_w, conv_b=conv_b, w_x=w_x, w_dt=w_dt,
                dt_b=dt_b, A_log=A_log, D=D_par, w_out=w_out), dt_rank


# ---------------- pure-JAX reference (same math as PyTorch forward) ----------
def mamba_ref(hidden, params, *, d_state, d_conv, dt_rank):
    B, L, D = hidden.shape
    f32 = jnp.float32
    w_in = params['w_in']
    d_inner = w_in.shape[0] // 2
    xz = jnp.einsum('bld,ed->ble', hidden.astype(f32), w_in)
    x, z = xz[..., :d_inner], xz[..., d_inner:]
    conv_w = params['conv_w'].reshape(d_inner, d_conv)
    xpad = jnp.pad(x, ((0, 0), (d_conv - 1, 0), (0, 0)))
    xc = jnp.zeros_like(x)
    for k in range(d_conv):
        xc = xc + xpad[:, k:k + L, :] * conv_w[:, k][None, None, :]
    xc = xc + params['conv_b'][None, None, :]
    xc = xc * jax.nn.sigmoid(xc)
    x_dbl = jnp.einsum('bld,ed->ble', xc, params['w_x'])
    dt_low = x_dbl[..., :dt_rank]
    Bm = x_dbl[..., dt_rank:dt_rank + d_state]
    Cm = x_dbl[..., dt_rank + d_state:]
    dt = jnp.einsum('blr,dr->bld', dt_low, params['w_dt'])
    delta = jax.nn.softplus(dt + params['dt_b'][None, None, :])
    A = -jnp.exp(params['A_log'])                   # (d_inner, d_state)

    def step(h_state, inputs):
        delta_t, B_t, C_t, u_t = inputs
        dA = jnp.exp(delta_t[:, :, None] * A[None, :, :])
        dBu = delta_t[:, :, None] * B_t[:, None, :] * u_t[:, :, None]
        h_state = dA * h_state + dBu
        y_t = jnp.einsum('bdn,bn->bd', h_state, C_t) \
            + params['D'][None, :] * u_t
        return h_state, y_t

    h0 = jnp.zeros((B, d_inner, d_state), f32)
    xs = (jnp.moveaxis(delta, 1, 0), jnp.moveaxis(Bm, 1, 0),
          jnp.moveaxis(Cm, 1, 0), jnp.moveaxis(xc, 1, 0))
    _, ys = lax.scan(step, h0, xs)
    y = jnp.moveaxis(ys, 0, 1)
    y = y * (z * jax.nn.sigmoid(z))
    return jnp.einsum('bld,ed->ble', y, params['w_out'])


if __name__ == "__main__":
    # small shapes consistent with the module: d_model=32 -> d_inner=64,
    # dt_rank=ceil(32/16)=2, d_state=16, d_conv=4
    B, L, d_model = 2, 16, 32
    d_state, d_conv, expand = 16, 4, 2

    key = jax.random.PRNGKey(0)
    kp, kx = jax.random.split(key)
    params, dt_rank = init_params(kp, d_model, d_state, d_conv, expand)
    hidden = jax.random.normal(kx, (B, L, d_model), jnp.float32)

    ref = jax.block_until_ready(
        mamba_ref(hidden, params, d_state=d_state, d_conv=d_conv,
                  dt_rank=dt_rank))

    # default path (f32 matmuls everywhere; single L tile)
    out = mamba_pallas(hidden, params, d_state=d_state, d_conv=d_conv,
                       dt_rank=dt_rank)
    out = jax.block_until_ready(out)
    assert out.shape == (B, L, d_model)
    err = float(jnp.max(jnp.abs(out - ref)))
    if err > 2e-2:
        raise AssertionError(f"kernel/reference mismatch: max abs err={err}")

    # multi-tile path: exercises the conv-state / SSM-state carry across
    # L-tiles (grid = (B, 2)).
    out_t = mamba_pallas(hidden, params, d_state=d_state, d_conv=d_conv,
                         dt_rank=dt_rank, l_tile=8, chunk=8)
    out_t = jax.block_until_ready(out_t)
    err_t = float(jnp.max(jnp.abs(out_t - ref)))
    if err_t > 2e-2:
        raise AssertionError(
            f"tiled kernel/reference mismatch: max abs err={err_t}")

    # TODO(synk): inference-time step()/cache path (conv_state/ssm_state) and
    # the mamba_inner_fn fast path are not part of the training forward and
    # are not implemented here.
    print("KERNEL_OK")
</pallas_src>

<mosaic_0001>
module attributes {stable_mosaic.version = 11 : i64} {
  func.func @_mamba_kernel(%arg0: i32, %arg1: i32, %arg2: memref<1x16x32xf32, #tpu.memory_space<vmem>>, %arg3: memref<32x64xf32, #tpu.memory_space<vmem>>, %arg4: memref<32x64xf32, #tpu.memory_space<vmem>>, %arg5: memref<4x64xf32, #tpu.memory_space<vmem>>, %arg6: memref<1x64xf32, #tpu.memory_space<vmem>>, %arg7: memref<64x384xf32, #tpu.memory_space<vmem>>, %arg8: memref<2x64xf32, #tpu.memory_space<vmem>>, %arg9: memref<1x64xf32, #tpu.memory_space<vmem>>, %arg10: memref<16x64xf32, #tpu.memory_space<vmem>>, %arg11: memref<1x64xf32, #tpu.memory_space<vmem>>, %arg12: memref<64x32xf32, #tpu.memory_space<vmem>>, %arg13: memref<1x16x32xf32, #tpu.memory_space<vmem>>, %arg14: memref<24x64xf32, #tpu.memory_space<vmem>>, %arg15: memref<16x64xf32, #tpu.memory_space<vmem>>, %arg16: memref<16x64xf32, #tpu.memory_space<vmem>>, %arg17: memref<16x16xf32, #tpu.memory_space<vmem>>, %arg18: memref<16x16xf32, #tpu.memory_space<vmem>>, %arg19: memref<16x64xf32, #tpu.memory_space<vmem>>, %arg20: memref<16x64xf32, #tpu.memory_space<vmem>>) attributes {dimension_semantics = [#tpu.dimension_semantics<parallel>, #tpu.dimension_semantics<arbitrary>], iteration_bounds = array<i64: 2, 1>, scalar_prefetch = 0 : i64, scratch_operands = 7 : i64, tpu.core_type = #tpu.core_type<tc>, window_params = [{transform_indices = @transform_0, window_bounds = array<i64: 1, 16, 32>}, {pipeline_mode = #tpu.pipeline_mode<synchronous>, transform_indices = @transform_1, window_bounds = array<i64: 32, 64>}, {pipeline_mode = #tpu.pipeline_mode<synchronous>, transform_indices = @transform_2, window_bounds = array<i64: 32, 64>}, {pipeline_mode = #tpu.pipeline_mode<synchronous>, transform_indices = @transform_3, window_bounds = array<i64: 4, 64>}, {pipeline_mode = #tpu.pipeline_mode<synchronous>, transform_indices = @transform_4, window_bounds = array<i64: 1, 64>}, {pipeline_mode = #tpu.pipeline_mode<synchronous>, transform_indices = @transform_5, window_bounds = array<i64: 64, 384>}, {pipeline_mode = #tpu.pipeline_mode<synchronous>, transform_indices = @transform_6, window_bounds = array<i64: 2, 64>}, {pipeline_mode = #tpu.pipeline_mode<synchronous>, transform_indices = @transform_7, window_bounds = array<i64: 1, 64>}, {pipeline_mode = #tpu.pipeline_mode<synchronous>, transform_indices = @transform_8, window_bounds = array<i64: 16, 64>}, {pipeline_mode = #tpu.pipeline_mode<synchronous>, transform_indices = @transform_9, window_bounds = array<i64: 1, 64>}, {pipeline_mode = #tpu.pipeline_mode<synchronous>, transform_indices = @transform_10, window_bounds = array<i64: 64, 32>}, {transform_indices = @transform_11, window_bounds = array<i64: 1, 16, 32>}]} {
    %c0_i32 = arith.constant 0 : i32
    %0 = arith.cmpi eq, %arg1, %c0_i32 : i32
    %1 = arith.extui %0 : i1 to i32
    %c0_i32_0 = arith.constant 0 : i32
    %2 = arith.cmpi ne, %1, %c0_i32_0 : i32
    scf.if %2 {
      %cst_104 = arith.constant 0.000000e+00 : f32
      %335 = vector.broadcast %cst_104 : f32 to vector<8x64xf32>
      %c0_105 = arith.constant 0 : index
      %c0_106 = arith.constant 0 : index
      %336 = vector.load %arg14[%c0_105, %c0_106] : memref<24x64xf32, #tpu.memory_space<vmem>>, vector<8x64xf32>
      tpu.vector_store %arg14[%c0_105, %c0_106], %335 {strides = array<i32>} : memref<24x64xf32, #tpu.memory_space<vmem>>, vector<8x64xf32>,
      %cst_107 = arith.constant 0.000000e+00 : f32
      %337 = vector.broadcast %cst_107 : f32 to vector<16x64xf32>
      %c0_108 = arith.constant 0 : index
      %c0_109 = arith.constant 0 : index
      %338 = vector.load %arg20[%c0_108, %c0_109] : memref<16x64xf32, #tpu.memory_space<vmem>>, vector<16x64xf32>
      tpu.vector_store %arg20[%c0_108, %c0_109], %337 {strides = array<i32>} : memref<16x64xf32, #tpu.memory_space<vmem>>, vector<16x64xf32>,
    } else {
    }
    %c0_i32_1 = arith.constant 0 : i32
    %3 = arith.cmpi sgt, %arg1, %c0_i32_1 : i32
    %4 = arith.extui %3 : i1 to i32
    %c0_i32_2 = arith.constant 0 : i32
    %5 = arith.cmpi ne, %4, %c0_i32_2 : i32
    scf.if %5 {
      %c21 = arith.constant 21 : index
      %c0_104 = arith.constant 0 : index
      %335 = vector.load %arg14[%c21, %c0_104] : memref<24x64xf32, #tpu.memory_space<vmem>>, vector<3x64xf32>
      %c5_105 = arith.constant 5 : index
      %c0_106 = arith.constant 0 : index
      %336 = vector.load %arg14[%c5_105, %c0_106] : memref<24x64xf32, #tpu.memory_space<vmem>>, vector<3x64xf32>
      tpu.vector_store %arg14[%c5_105, %c0_106], %335 {strides = array<i32>} : memref<24x64xf32, #tpu.memory_space<vmem>>, vector<3x64xf32>,
    } else {
    }
    %c0 = arith.constant 0 : index
    %c0_3 = arith.constant 0 : index
    %c0_4 = arith.constant 0 : index
    %6 = vector.load %arg2[%c0, %c0_3, %c0_4] : memref<1x16x32xf32, #tpu.memory_space<vmem>>, vector<1x16x32xf32>
    %7 = vector.shape_cast %6 : vector<1x16x32xf32> to vector<16x32xf32>
    %c0_5 = arith.constant 0 : index
    %c0_6 = arith.constant 0 : index
    %8 = vector.load %arg3[%c0_5, %c0_6] : memref<32x64xf32, #tpu.memory_space<vmem>>, vector<32x64xf32>
    %cst = arith.constant dense<0.000000e+00> : vector<16x64xf32>
    %9 = tpu.matmul %7, %8, %cst {dimension_numbers = #tpu.dot_dimension_numbers<[1], [0], [0], [1], [0, 0, 1, 1], [], []>} : vector<16x32xf32>, vector<32x64xf32>, vector<16x64xf32> -> vector<16x64xf32>
    %c8 = arith.constant 8 : index
    %c0_7 = arith.constant 0 : index
    %10 = vector.load %arg14[%c8, %c0_7] : memref<24x64xf32, #tpu.memory_space<vmem>>, vector<16x64xf32>
    tpu.vector_store %arg14[%c8, %c0_7], %9 {strides = array<i32>} : memref<24x64xf32, #tpu.memory_space<vmem>>, vector<16x64xf32>,
    %cst_8 = arith.constant 0.000000e+00 : f32
    %11 = vector.broadcast %cst_8 : f32 to vector<16x64xf32>
    %c5 = arith.constant 5 : index
    %c0_9 = arith.constant 0 : index
    %12 = vector.load %arg14[%c5, %c0_9] : memref<24x64xf32, #tpu.memory_space<vmem>>, vector<16x64xf32>
    %c0_10 = arith.constant 0 : index
    %c0_11 = arith.constant 0 : index
    %13 = vector.load %arg5[%c0_10, %c0_11] : memref<4x64xf32, #tpu.memory_space<vmem>>, vector<1x64xf32>
    %14 = vector.broadcast %13 : vector<1x64xf32> to vector<16x64xf32>
    %15 = arith.mulf %12, %14 : vector<16x64xf32>
    %16 = arith.addf %11, %15 : vector<16x64xf32>
    %c6 = arith.constant 6 : index
    %c0_12 = arith.constant 0 : index
    %17 = vector.load %arg14[%c6, %c0_12] : memref<24x64xf32, #tpu.memory_space<vmem>>, vector<16x64xf32>
    %c1 = arith.constant 1 : index
    %c0_13 = arith.constant 0 : index
    %18 = vector.load %arg5[%c1, %c0_13] : memref<4x64xf32, #tpu.memory_space<vmem>>, vector<1x64xf32>
    %19 = vector.broadcast %18 : vector<1x64xf32> to vector<16x64xf32>
    %20 = arith.mulf %17, %19 : vector<16x64xf32>
    %21 = arith.addf %16, %20 : vector<16x64xf32>
    %c7 = arith.constant 7 : index
    %c0_14 = arith.constant 0 : index
    %22 = vector.load %arg14[%c7, %c0_14] : memref<24x64xf32, #tpu.memory_space<vmem>>, vector<16x64xf32>
    %c2 = arith.constant 2 : index
    %c0_15 = arith.constant 0 : index
    %23 = vector.load %arg5[%c2, %c0_15] : memref<4x64xf32, #tpu.memory_space<vmem>>, vector<1x64xf32>
    %24 = vector.broadcast %23 : vector<1x64xf32> to vector<16x64xf32>
    %25 = arith.mulf %22, %24 : vector<16x64xf32>
    %26 = arith.addf %21, %25 : vector<16x64xf32>
    %c8_16 = arith.constant 8 : index
    %c0_17 = arith.constant 0 : index
    %27 = vector.load %arg14[%c8_16, %c0_17] : memref<24x64xf32, #tpu.memory_space<vmem>>, vector<16x64xf32>
    %c3 = arith.constant 3 : index
    %c0_18 = arith.constant 0 : index
    %28 = vector.load %arg5[%c3, %c0_18] : memref<4x64xf32, #tpu.memory_space<vmem>>, vector<1x64xf32>
    %29 = vector.broadcast %28 : vector<1x64xf32> to vector<16x64xf32>
    %30 = arith.mulf %27, %29 : vector<16x64xf32>
    %31 = arith.addf %26, %30 : vector<16x64xf32>
    %c0_19 = arith.constant 0 : index
    %c0_20 = arith.constant 0 : index
    %32 = vector.load %arg6[%c0_19, %c0_20] : memref<1x64xf32, #tpu.memory_space<vmem>>, vector<1x64xf32>
    %33 = vector.broadcast %32 : vector<1x64xf32> to vector<16x64xf32>
    %34 = arith.addf %31, %33 : vector<16x64xf32>
    %35 = arith.negf %34 : vector<16x64xf32>
    %36 = math.exp %35 : vector<16x64xf32>
    %cst_21 = arith.constant 1.000000e+00 : f32
    %37 = vector.broadcast %cst_21 : f32 to vector<16x64xf32>
    %38 = arith.addf %37, %36 : vector<16x64xf32>
    %39 = arith.divf %37, %38 : vector<16x64xf32>
    %40 = arith.mulf %34, %39 : vector<16x64xf32>
    %c0_22 = arith.constant 0 : index
    %c0_23 = arith.constant 0 : index
    %41 = vector.load %arg16[%c0_22, %c0_23] : memref<16x64xf32, #tpu.memory_space<vmem>>, vector<16x64xf32>
    tpu.vector_store %arg16[%c0_22, %c0_23], %40 {strides = array<i32>} : memref<16x64xf32, #tpu.memory_space<vmem>>, vector<16x64xf32>,
    %c0_24 = arith.constant 0 : index
    %c0_25 = arith.constant 0 : index
    %42 = vector.load %arg7[%c0_24, %c0_25] : memref<64x384xf32, #tpu.memory_space<vmem>>, vector<64x384xf32>
    %cst_26 = arith.constant dense<0.000000e+00> : vector<16x384xf32>
    %43 = tpu.matmul %40, %42, %cst_26 {dimension_numbers = #tpu.dot_dimension_numbers<[1], [0], [0], [1], [0, 0, 1, 1], [], []>} : vector<16x64xf32>, vector<64x384xf32>, vector<16x384xf32> -> vector<16x384xf32>
    %44 = vector.extract_strided_slice %43 {offsets = [0, 0], sizes = [16, 2], strides = [1, 1]} : vector<16x384xf32> to vector<16x2xf32>
    %45 = vector.extract_strided_slice %43 {offsets = [0, 128], sizes = [16, 16], strides = [1, 1]} : vector<16x384xf32> to vector<16x16xf32>
    %c0_27 = arith.constant 0 : index
    %c0_28 = arith.constant 0 : index
    %46 = vector.load %arg17[%c0_27, %c0_28] : memref<16x16xf32, #tpu.memory_space<vmem>>, vector<16x16xf32>
    tpu.vector_store %arg17[%c0_27, %c0_28], %45 {strides = array<i32>} : memref<16x16xf32, #tpu.memory_space<vmem>>, vector<16x16xf32>,
    %47 = vector.extract_strided_slice %43 {offsets = [0, 256], sizes = [16, 16], strides = [1, 1]} : vector<16x384xf32> to vector<16x16xf32>
    %c0_29 = arith.constant 0 : index
    %c0_30 = arith.constant 0 : index
    %48 = vector.load %arg18[%c0_29, %c0_30] : memref<16x16xf32, #tpu.memory_space<vmem>>, vector<16x16xf32>
    tpu.vector_store %arg18[%c0_29, %c0_30], %47 {strides = array<i32>} : memref<16x16xf32, #tpu.memory_space<vmem>>, vector<16x16xf32>,
    %c0_31 = arith.constant 0 : index
    %c0_32 = arith.constant 0 : index
    %49 = vector.load %arg8[%c0_31, %c0_32] : memref<2x64xf32, #tpu.memory_space<vmem>>, vector<2x64xf32>
    %cst_33 = arith.constant dense<0.000000e+00> : vector<16x64xf32>
    %50 = tpu.matmul %44, %49, %cst_33 {dimension_numbers = #tpu.dot_dimension_numbers<[1], [0], [0], [1], [0, 0, 1, 1], [], []>} : vector<16x2xf32>, vector<2x64xf32>, vector<16x64xf32> -> vector<16x64xf32>
    %c0_34 = arith.constant 0 : index
    %c0_35 = arith.constant 0 : index
    %51 = vector.load %arg9[%c0_34, %c0_35] : memref<1x64xf32, #tpu.memory_space<vmem>>, vector<1x64xf32>
    %52 = vector.broadcast %51 : vector<1x64xf32> to vector<16x64xf32>
    %53 = arith.addf %50, %52 : vector<16x64xf32>
    %cst_36 = arith.constant 0.000000e+00 : f32
    %54 = vector.broadcast %cst_36 : f32 to vector<16x64xf32>
    %55 = arith.maximumf %53, %54 : vector<16x64xf32>
    %56 = math.absf %53 : vector<16x64xf32>
    %cst_37 = arith.constant 0.000000e+00 : f32
    %57 = vector.broadcast %cst_37 : f32 to vector<16x64xf32>
    %58 = arith.subf %57, %56 : vector<16x64xf32>
    %59 = math.exp %58 : vector<16x64xf32>
    %60 = math.log1p %59 : vector<16x64xf32>
    %61 = arith.addf %55, %60 : vector<16x64xf32>
    %c0_38 = arith.constant 0 : index
    %c0_39 = arith.constant 0 : index
    %62 = vector.load %arg15[%c0_38, %c0_39] : memref<16x64xf32, #tpu.memory_space<vmem>>, vector<16x64xf32>
    tpu.vector_store %arg15[%c0_38, %c0_39], %61 {strides = array<i32>} : memref<16x64xf32, #tpu.memory_space<vmem>>, vector<16x64xf32>,
    %c0_40 = arith.constant 0 : index
    %c0_41 = arith.constant 0 : index
    %63 = vector.load %arg10[%c0_40, %c0_41] : memref<16x64xf32, #tpu.memory_space<vmem>>, vector<16x64xf32>
    %64 = vector.shape_cast %63 : vector<16x64xf32> to vector<1x16x64xf32>
    %c0_42 = arith.constant 0 : index
    %c0_43 = arith.constant 0 : index
    %65 = vector.load %arg20[%c0_42, %c0_43] : memref<16x64xf32, #tpu.memory_space<vmem>>, vector<16x64xf32>
    %c0_i32_44 = arith.constant 0 : i32
    %c16_i32 = arith.constant 16 : i32
    %66 = arith.muli %c0_i32_44, %c16_i32 : i32
    %67 = tpu.assume_multiple %66, 16 : i32
    %68 = arith.index_cast %67 : i32 to index
    %c0_45 = arith.constant 0 : index
    %69 = vector.load %arg15[%68, %c0_45] : memref<16x64xf32, #tpu.memory_space<vmem>>, vector<16x64xf32>
    %70 = arith.index_cast %67 : i32 to index
    %c0_46 = arith.constant 0 : index
    %71 = vector.load %arg16[%70, %c0_46] : memref<16x64xf32, #tpu.memory_space<vmem>>, vector<16x64xf32>
    %72 = arith.mulf %69, %71 : vector<16x64xf32>
    %73 = arith.index_cast %67 : i32 to index
    %c0_47 = arith.constant 0 : index
    %74 = vector.load %arg17[%73, %c0_47] : memref<16x16xf32, #tpu.memory_space<vmem>>, vector<16x16xf32>
    %75 = arith.index_cast %67 : i32 to index
    %c0_48 = arith.constant 0 : index
    %76 = vector.load %arg18[%75, %c0_48] : memref<16x16xf32, #tpu.memory_space<vmem>>, vector<16x16xf32>
    %77 = tpu.transpose %76, [1, 0] : vector<16x16xf32> -> vector<16x16xf32>
    %78 = vector.shape_cast %69 : vector<16x64xf32> to vector<16x1x64xf32>
    %79 = vector.broadcast %78 : vector<16x1x64xf32> to vector<16x16x64xf32>
    %80 = vector.broadcast %64 : vector<1x16x64xf32> to vector<16x16x64xf32>
    %81 = arith.mulf %79, %80 : vector<16x16x64xf32>
    %82 = math.exp %81 : vector<16x16x64xf32>
    %83 = vector.shape_cast %74 : vector<16x16xf32> to vector<16x16x1xf32>
    %84 = vector.shape_cast %72 : vector<16x64xf32> to vector<16x1x64xf32>
    %85 = vector.broadcast %83 : vector<16x16x1xf32> to vector<16x16x64xf32>
    %86 = vector.broadcast %84 : vector<16x1x64xf32> to vector<16x16x64xf32>
    %87 = arith.mulf %85, %86 : vector<16x16x64xf32>
    %88 = vector.extract_strided_slice %82 {offsets = [0, 0, 0], sizes = [1, 16, 64], strides = [1, 1, 1]} : vector<16x16x64xf32> to vector<1x16x64xf32>
    %89 = vector.shape_cast %88 : vector<1x16x64xf32> to vector<16x64xf32>
    %90 = arith.mulf %89, %65 : vector<16x64xf32>
    %91 = vector.extract_strided_slice %87 {offsets = [0, 0, 0], sizes = [1, 16, 64], strides = [1, 1, 1]} : vector<16x16x64xf32> to vector<1x16x64xf32>
    %92 = vector.shape_cast %91 : vector<1x16x64xf32> to vector<16x64xf32>
    %93 = arith.addf %90, %92 : vector<16x64xf32>
    %94 = vector.extract_strided_slice %77 {offsets = [0, 0], sizes = [16, 1], strides = [1, 1]} : vector<16x16xf32> to vector<16x1xf32>
    %95 = vector.broadcast %94 : vector<16x1xf32> to vector<16x64xf32>
    %96 = arith.mulf %95, %93 : vector<16x64xf32>
    %cst_49 = arith.constant dense<0.000000e+00> : vector<64xf32>
    %97 = vector.multi_reduction <add>, %96, %cst_49 [0] : vector<16x64xf32> to vector<64xf32>
    %98 = vector.shape_cast %97 : vector<64xf32> to vector<1x64xf32>
    %c0_i32_50 = arith.constant 0 : i32
    %99 = arith.addi %67, %c0_i32_50 : i32
    %100 = arith.index_cast %99 : i32 to index
    %c0_51 = arith.constant 0 : index
    %101 = vector.load %arg19[%100, %c0_51] : memref<16x64xf32, #tpu.memory_space<vmem>>, vector<1x64xf32>
    tpu.vector_store %arg19[%100, %c0_51], %98 {strides = array<i32>} : memref<16x64xf32, #tpu.memory_space<vmem>>, vector<1x64xf32>,
    %102 = vector.extract_strided_slice %82 {offsets = [1, 0, 0], sizes = [1, 16, 64], strides = [1, 1, 1]} : vector<16x16x64xf32> to vector<1x16x64xf32>
    %103 = vector.shape_cast %102 : vector<1x16x64xf32> to vector<16x64xf32>
    %104 = arith.mulf %103, %93 : vector<16x64xf32>
    %105 = vector.extract_strided_slice %87 {offsets = [1, 0, 0], sizes = [1, 16, 64], strides = [1, 1, 1]} : vector<16x16x64xf32> to vector<1x16x64xf32>
    %106 = vector.shape_cast %105 : vector<1x16x64xf32> to vector<16x64xf32>
    %107 = arith.addf %104, %106 : vector<16x64xf32>
    %108 = vector.extract_strided_slice %77 {offsets = [0, 1], sizes = [16, 1], strides = [1, 1]} : vector<16x16xf32> to vector<16x1xf32>
    %109 = vector.broadcast %108 : vector<16x1xf32> to vector<16x64xf32>
    %110 = arith.mulf %109, %107 : vector<16x64xf32>
    %cst_52 = arith.constant dense<0.000000e+00> : vector<64xf32>
    %111 = vector.multi_reduction <add>, %110, %cst_52 [0] : vector<16x64xf32> to vector<64xf32>
    %112 = vector.shape_cast %111 : vector<64xf32> to vector<1x64xf32>
    %c1_i32 = arith.constant 1 : i32
    %113 = arith.addi %67, %c1_i32 : i32
    %114 = arith.index_cast %113 : i32 to index
    %c0_53 = arith.constant 0 : index
    %115 = vector.load %arg19[%114, %c0_53] : memref<16x64xf32, #tpu.memory_space<vmem>>, vector<1x64xf32>
    tpu.vector_store %arg19[%114, %c0_53], %112 {strides = array<i32>} : memref<16x64xf32, #tpu.memory_space<vmem>>, vector<1x64xf32>,
    %116 = vector.extract_strided_slice %82 {offsets = [2, 0, 0], sizes = [1, 16, 64], strides = [1, 1, 1]} : vector<16x16x64xf32> to vector<1x16x64xf32>
    %117 = vector.shape_cast %116 : vector<1x16x64xf32> to vector<16x64xf32>
    %118 = arith.mulf %117, %107 : vector<16x64xf32>
    %119 = vector.extract_strided_slice %87 {offsets = [2, 0, 0], sizes = [1, 16, 64], strides = [1, 1, 1]} : vector<16x16x64xf32> to vector<1x16x64xf32>
    %120 = vector.shape_cast %119 : vector<1x16x64xf32> to vector<16x64xf32>
    %121 = arith.addf %118, %120 : vector<16x64xf32>
    %122 = vector.extract_strided_slice %77 {offsets = [0, 2], sizes = [16, 1], strides = [1, 1]} : vector<16x16xf32> to vector<16x1xf32>
    %123 = vector.broadcast %122 : vector<16x1xf32> to vector<16x64xf32>
    %124 = arith.mulf %123, %121 : vector<16x64xf32>
    %cst_54 = arith.constant dense<0.000000e+00> : vector<64xf32>
    %125 = vector.multi_reduction <add>, %124, %cst_54 [0] : vector<16x64xf32> to vector<64xf32>
    %126 = vector.shape_cast %125 : vector<64xf32> to vector<1x64xf32>
    %c2_i32 = arith.constant 2 : i32
    %127 = arith.addi %67, %c2_i32 : i32
    %128 = arith.index_cast %127 : i32 to index
    %c0_55 = arith.constant 0 : index
    %129 = vector.load %arg19[%128, %c0_55] : memref<16x64xf32, #tpu.memory_space<vmem>>, vector<1x64xf32>
    tpu.vector_store %arg19[%128, %c0_55], %126 {strides = array<i32>} : memref<16x64xf32, #tpu.memory_space<vmem>>, vector<1x64xf32>,
    %130 = vector.extract_strided_slice %82 {offsets = [3, 0, 0], sizes = [1, 16, 64], strides = [1, 1, 1]} : vector<16x16x64xf32> to vector<1x16x64xf32>
    %131 = vector.shape_cast %130 : vector<1x16x64xf32> to vector<16x64xf32>
    %132 = arith.mulf %131, %121 : vector<16x64xf32>
    %133 = vector.extract_strided_slice %87 {offsets = [3, 0, 0], sizes = [1, 16, 64], strides = [1, 1, 1]} : vector<16x16x64xf32> to vector<1x16x64xf32>
    %134 = vector.shape_cast %133 : vector<1x16x64xf32> to vector<16x64xf32>
    %135 = arith.addf %132, %134 : vector<16x64xf32>
    %136 = vector.extract_strided_slice %77 {offsets = [0, 3], sizes = [16, 1], strides = [1, 1]} : vector<16x16xf32> to vector<16x1xf32>
    %137 = vector.broadcast %136 : vector<16x1xf32> to vector<16x64xf32>
    %138 = arith.mulf %137, %135 : vector<16x64xf32>
    %cst_56 = arith.constant dense<0.000000e+00> : vector<64xf32>
    %139 = vector.multi_reduction <add>, %138, %cst_56 [0] : vector<16x64xf32> to vector<64xf32>
    %140 = vector.shape_cast %139 : vector<64xf32> to vector<1x64xf32>
    %c3_i32 = arith.constant 3 : i32
    %141 = arith.addi %67, %c3_i32 : i32
    %142 = arith.index_cast %141 : i32 to index
    %c0_57 = arith.constant 0 : index
    %143 = vector.load %arg19[%142, %c0_57] : memref<16x64xf32, #tpu.memory_space<vmem>>, vector<1x64xf32>
    tpu.vector_store %arg19[%142, %c0_57], %140 {strides = array<i32>} : memref<16x64xf32, #tpu.memory_space<vmem>>, vector<1x64xf32>,
    %144 = vector.extract_strided_slice %82 {offsets = [4, 0, 0], sizes = [1, 16, 64], strides = [1, 1, 1]} : vector<16x16x64xf32> to vector<1x16x64xf32>
    %145 = vector.shape_cast %144 : vector<1x16x64xf32> to vector<16x64xf32>
    %146 = arith.mulf %145, %135 : vector<16x64xf32>
    %147 = vector.extract_strided_slice %87 {offsets = [4, 0, 0], sizes = [1, 16, 64], strides = [1, 1, 1]} : vector<16x16x64xf32> to vector<1x16x64xf32>
    %148 = vector.shape_cast %147 : vector<1x16x64xf32> to vector<16x64xf32>
    %149 = arith.addf %146, %148 : vector<16x64xf32>
    %150 = vector.extract_strided_slice %77 {offsets = [0, 4], sizes = [16, 1], strides = [1, 1]} : vector<16x16xf32> to vector<16x1xf32>
    %151 = vector.broadcast %150 : vector<16x1xf32> to vector<16x64xf32>
    %152 = arith.mulf %151, %149 : vector<16x64xf32>
    %cst_58 = arith.constant dense<0.000000e+00> : vector<64xf32>
    %153 = vector.multi_reduction <add>, %152, %cst_58 [0] : vector<16x64xf32> to vector<64xf32>
    %154 = vector.shape_cast %153 : vector<64xf32> to vector<1x64xf32>
    %c4_i32 = arith.constant 4 : i32
    %155 = arith.addi %67, %c4_i32 : i32
    %156 = arith.index_cast %155 : i32 to index
    %c0_59 = arith.constant 0 : index
    %157 = vector.load %arg19[%156, %c0_59] : memref<16x64xf32, #tpu.memory_space<vmem>>, vector<1x64xf32>
    tpu.vector_store %arg19[%156, %c0_59], %154 {strides = array<i32>} : memref<16x64xf32, #tpu.memory_space<vmem>>, vector<1x64xf32>,
    %158 = vector.extract_strided_slice %82 {offsets = [5, 0, 0], sizes = [1, 16, 64], strides = [1, 1, 1]} : vector<16x16x64xf32> to vector<1x16x64xf32>
    %159 = vector.shape_cast %158 : vector<1x16x64xf32> to vector<16x64xf32>
    %160 = arith.mulf %159, %149 : vector<16x64xf32>
    %161 = vector.extract_strided_slice %87 {offsets = [5, 0, 0], sizes = [1, 16, 64], strides = [1, 1, 1]} : vector<16x16x64xf32> to vector<1x16x64xf32>
    %162 = vector.shape_cast %161 : vector<1x16x64xf32> to vector<16x64xf32>
    %163 = arith.addf %160, %162 : vector<16x64xf32>
    %164 = vector.extract_strided_slice %77 {offsets = [0, 5], sizes = [16, 1], strides = [1, 1]} : vector<16x16xf32> to vector<16x1xf32>
    %165 = vector.broadcast %164 : vector<16x1xf32> to vector<16x64xf32>
    %166 = arith.mulf %165, %163 : vector<16x64xf32>
    %cst_60 = arith.constant dense<0.000000e+00> : vector<64xf32>
    %167 = vector.multi_reduction <add>, %166, %cst_60 [0] : vector<16x64xf32> to vector<64xf32>
    %168 = vector.shape_cast %167 : vector<64xf32> to vector<1x64xf32>
    %c5_i32 = arith.constant 5 : i32
    %169 = arith.addi %67, %c5_i32 : i32
    %170 = arith.index_cast %169 : i32 to index
    %c0_61 = arith.constant 0 : index
    %171 = vector.load %arg19[%170, %c0_61] : memref<16x64xf32, #tpu.memory_space<vmem>>, vector<1x64xf32>
    tpu.vector_store %arg19[%170, %c0_61], %168 {strides = array<i32>} : memref<16x64xf32, #tpu.memory_space<vmem>>, vector<1x64xf32>,
    %172 = vector.extract_strided_slice %82 {offsets = [6, 0, 0], sizes = [1, 16, 64], strides = [1, 1, 1]} : vector<16x16x64xf32> to vector<1x16x64xf32>
    %173 = vector.shape_cast %172 : vector<1x16x64xf32> to vector<16x64xf32>
    %174 = arith.mulf %173, %163 : vector<16x64xf32>
    %175 = vector.extract_strided_slice %87 {offsets = [6, 0, 0], sizes = [1, 16, 64], strides = [1, 1, 1]} : vector<16x16x64xf32> to vector<1x16x64xf32>
    %176 = vector.shape_cast %175 : vector<1x16x64xf32> to vector<16x64xf32>
    %177 = arith.addf %174, %176 : vector<16x64xf32>
    %178 = vector.extract_strided_slice %77 {offsets = [0, 6], sizes = [16, 1], strides = [1, 1]} : vector<16x16xf32> to vector<16x1xf32>
    %179 = vector.broadcast %178 : vector<16x1xf32> to vector<16x64xf32>
    %180 = arith.mulf %179, %177 : vector<16x64xf32>
    %cst_62 = arith.constant dense<0.000000e+00> : vector<64xf32>
    %181 = vector.multi_reduction <add>, %180, %cst_62 [0] : vector<16x64xf32> to vector<64xf32>
    %182 = vector.shape_cast %181 : vector<64xf32> to vector<1x64xf32>
    %c6_i32 = arith.constant 6 : i32
    %183 = arith.addi %67, %c6_i32 : i32
    %184 = arith.index_cast %183 : i32 to index
    %c0_63 = arith.constant 0 : index
    %185 = vector.load %arg19[%184, %c0_63] : memref<16x64xf32, #tpu.memory_space<vmem>>, vector<1x64xf32>
    tpu.vector_store %arg19[%184, %c0_63], %182 {strides = array<i32>} : memref<16x64xf32, #tpu.memory_space<vmem>>, vector<1x64xf32>,
    %186 = vector.extract_strided_slice %82 {offsets = [7, 0, 0], sizes = [1, 16, 64], strides = [1, 1, 1]} : vector<16x16x64xf32> to vector<1x16x64xf32>
    %187 = vector.shape_cast %186 : vector<1x16x64xf32> to vector<16x64xf32>
    %188 = arith.mulf %187, %177 : vector<16x64xf32>
    %189 = vector.extract_strided_slice %87 {offsets = [7, 0, 0], sizes = [1, 16, 64], strides = [1, 1, 1]} : vector<16x16x64xf32> to vector<1x16x64xf32>
    %190 = vector.shape_cast %189 : vector<1x16x64xf32> to vector<16x64xf32>
    %191 = arith.addf %188, %190 : vector<16x64xf32>
    %192 = vector.extract_strided_slice %77 {offsets = [0, 7], sizes = [16, 1], strides = [1, 1]} : vector<16x16xf32> to vector<16x1xf32>
    %193 = vector.broadcast %192 : vector<16x1xf32> to vector<16x64xf32>
    %194 = arith.mulf %193, %191 : vector<16x64xf32>
    %cst_64 = arith.constant dense<0.000000e+00> : vector<64xf32>
    %195 = vector.multi_reduction <add>, %194, %cst_64 [0] : vector<16x64xf32> to vector<64xf32>
    %196 = vector.shape_cast %195 : vector<64xf32> to vector<1x64xf32>
    %c7_i32 = arith.constant 7 : i32
    %197 = arith.addi %67, %c7_i32 : i32
    %198 = arith.index_cast %197 : i32 to index
    %c0_65 = arith.constant 0 : index
    %199 = vector.load %arg19[%198, %c0_65] : memref<16x64xf32, #tpu.memory_space<vmem>>, vector<1x64xf32>
    tpu.vector_store %arg19[%198, %c0_65], %196 {strides = array<i32>} : memref<16x64xf32, #tpu.memory_space<vmem>>, vector<1x64xf32>,
    %200 = vector.extract_strided_slice %82 {offsets = [8, 0, 0], sizes = [1, 16, 64], strides = [1, 1, 1]} : vector<16x16x64xf32> to vector<1x16x64xf32>
    %201 = vector.shape_cast %200 : vector<1x16x64xf32> to vector<16x64xf32>
    %202 = arith.mulf %201, %191 : vector<16x64xf32>
    %203 = vector.extract_strided_slice %87 {offsets = [8, 0, 0], sizes = [1, 16, 64], strides = [1, 1, 1]} : vector<16x16x64xf32> to vector<1x16x64xf32>
    %204 = vector.shape_cast %203 : vector<1x16x64xf32> to vector<16x64xf32>
    %205 = arith.addf %202, %204 : vector<16x64xf32>
    %206 = vector.extract_strided_slice %77 {offsets = [0, 8], sizes = [16, 1], strides = [1, 1]} : vector<16x16xf32> to vector<16x1xf32>
    %207 = vector.broadcast %206 : vector<16x1xf32> to vector<16x64xf32>
    %208 = arith.mulf %207, %205 : vector<16x64xf32>
    %cst_66 = arith.constant dense<0.000000e+00> : vector<64xf32>
    %209 = vector.multi_reduction <add>, %208, %cst_66 [0] : vector<16x64xf32> to vector<64xf32>
    %210 = vector.shape_cast %209 : vector<64xf32> to vector<1x64xf32>
    %c8_i32 = arith.constant 8 : i32
    %211 = arith.addi %67, %c8_i32 : i32
    %212 = arith.index_cast %211 : i32 to index
    %c0_67 = arith.constant 0 : index
    %213 = vector.load %arg19[%212, %c0_67] : memref<16x64xf32, #tpu.memory_space<vmem>>, vector<1x64xf32>
    tpu.vector_store %arg19[%212, %c0_67], %210 {strides = array<i32>} : memref<16x64xf32, #tpu.memory_space<vmem>>, vector<1x64xf32>,
    %214 = vector.extract_strided_slice %82 {offsets = [9, 0, 0], sizes = [1, 16, 64], strides = [1, 1, 1]} : vector<16x16x64xf32> to vector<1x16x64xf32>
    %215 = vector.shape_cast %214 : vector<1x16x64xf32> to vector<16x64xf32>
    %216 = arith.mulf %215, %205 : vector<16x64xf32>
    %217 = vector.extract_strided_slice %87 {offsets = [9, 0, 0], sizes = [1, 16, 64], strides = [1, 1, 1]} : vector<16x16x64xf32> to vector<1x16x64xf32>
    %218 = vector.shape_cast %217 : vector<1x16x64xf32> to vector<16x64xf32>
    %219 = arith.addf %216, %218 : vector<16x64xf32>
    %220 = vector.extract_strided_slice %77 {offsets = [0, 9], sizes = [16, 1], strides = [1, 1]} : vector<16x16xf32> to vector<16x1xf32>
    %221 = vector.broadcast %220 : vector<16x1xf32> to vector<16x64xf32>
    %222 = arith.mulf %221, %219 : vector<16x64xf32>
    %cst_68 = arith.constant dense<0.000000e+00> : vector<64xf32>
    %223 = vector.multi_reduction <add>, %222, %cst_68 [0] : vector<16x64xf32> to vector<64xf32>
    %224 = vector.shape_cast %223 : vector<64xf32> to vector<1x64xf32>
    %c9_i32 = arith.constant 9 : i32
    %225 = arith.addi %67, %c9_i32 : i32
    %226 = arith.index_cast %225 : i32 to index
    %c0_69 = arith.constant 0 : index
    %227 = vector.load %arg19[%226, %c0_69] : memref<16x64xf32, #tpu.memory_space<vmem>>, vector<1x64xf32>
    tpu.vector_store %arg19[%226, %c0_69], %224 {strides = array<i32>} : memref<16x64xf32, #tpu.memory_space<vmem>>, vector<1x64xf32>,
    %228 = vector.extract_strided_slice %82 {offsets = [10, 0, 0], sizes = [1, 16, 64], strides = [1, 1, 1]} : vector<16x16x64xf32> to vector<1x16x64xf32>
    %229 = vector.shape_cast %228 : vector<1x16x64xf32> to vector<16x64xf32>
    %230 = arith.mulf %229, %219 : vector<16x64xf32>
    %231 = vector.extract_strided_slice %87 {offsets = [10, 0, 0], sizes = [1, 16, 64], strides = [1, 1, 1]} : vector<16x16x64xf32> to vector<1x16x64xf32>
    %232 = vector.shape_cast %231 : vector<1x16x64xf32> to vector<16x64xf32>
    %233 = arith.addf %230, %232 : vector<16x64xf32>
    %234 = vector.extract_strided_slice %77 {offsets = [0, 10], sizes = [16, 1], strides = [1, 1]} : vector<16x16xf32> to vector<16x1xf32>
    %235 = vector.broadcast %234 : vector<16x1xf32> to vector<16x64xf32>
    %236 = arith.mulf %235, %233 : vector<16x64xf32>
    %cst_70 = arith.constant dense<0.000000e+00> : vector<64xf32>
    %237 = vector.multi_reduction <add>, %236, %cst_70 [0] : vector<16x64xf32> to vector<64xf32>
    %238 = vector.shape_cast %237 : vector<64xf32> to vector<1x64xf32>
    %c10_i32 = arith.constant 10 : i32
    %239 = arith.addi %67, %c10_i32 : i32
    %240 = arith.index_cast %239 : i32 to index
    %c0_71 = arith.constant 0 : index
    %241 = vector.load %arg19[%240, %c0_71] : memref<16x64xf32, #tpu.memory_space<vmem>>, vector<1x64xf32>
    tpu.vector_store %arg19[%240, %c0_71], %238 {strides = array<i32>} : memref<16x64xf32, #tpu.memory_space<vmem>>, vector<1x64xf32>,
    %242 = vector.extract_strided_slice %82 {offsets = [11, 0, 0], sizes = [1, 16, 64], strides = [1, 1, 1]} : vector<16x16x64xf32> to vector<1x16x64xf32>
    %243 = vector.shape_cast %242 : vector<1x16x64xf32> to vector<16x64xf32>
    %244 = arith.mulf %243, %233 : vector<16x64xf32>
    %245 = vector.extract_strided_slice %87 {offsets = [11, 0, 0], sizes = [1, 16, 64], strides = [1, 1, 1]} : vector<16x16x64xf32> to vector<1x16x64xf32>
    %246 = vector.shape_cast %245 : vector<1x16x64xf32> to vector<16x64xf32>
    %247 = arith.addf %244, %246 : vector<16x64xf32>
    %248 = vector.extract_strided_slice %77 {offsets = [0, 11], sizes = [16, 1], strides = [1, 1]} : vector<16x16xf32> to vector<16x1xf32>
    %249 = vector.broadcast %248 : vector<16x1xf32> to vector<16x64xf32>
    %250 = arith.mulf %249, %247 : vector<16x64xf32>
    %cst_72 = arith.constant dense<0.000000e+00> : vector<64xf32>
    %251 = vector.multi_reduction <add>, %250, %cst_72 [0] : vector<16x64xf32> to vector<64xf32>
    %252 = vector.shape_cast %251 : vector<64xf32> to vector<1x64xf32>
    %c11_i32 = arith.constant 11 : i32
    %253 = arith.addi %67, %c11_i32 : i32
    %254 = arith.index_cast %253 : i32 to index
    %c0_73 = arith.constant 0 : index
    %255 = vector.load %arg19[%254, %c0_73] : memref<16x64xf32, #tpu.memory_space<vmem>>, vector<1x64xf32>
    tpu.vector_store %arg19[%254, %c0_73], %252 {strides = array<i32>} : memref<16x64xf32, #tpu.memory_space<vmem>>, vector<1x64xf32>,
    %256 = vector.extract_strided_slice %82 {offsets = [12, 0, 0], sizes = [1, 16, 64], strides = [1, 1, 1]} : vector<16x16x64xf32> to vector<1x16x64xf32>
    %257 = vector.shape_cast %256 : vector<1x16x64xf32> to vector<16x64xf32>
    %258 = arith.mulf %257, %247 : vector<16x64xf32>
    %259 = vector.extract_strided_slice %87 {offsets = [12, 0, 0], sizes = [1, 16, 64], strides = [1, 1, 1]} : vector<16x16x64xf32> to vector<1x16x64xf32>
    %260 = vector.shape_cast %259 : vector<1x16x64xf32> to vector<16x64xf32>
    %261 = arith.addf %258, %260 : vector<16x64xf32>
    %262 = vector.extract_strided_slice %77 {offsets = [0, 12], sizes = [16, 1], strides = [1, 1]} : vector<16x16xf32> to vector<16x1xf32>
    %263 = vector.broadcast %262 : vector<16x1xf32> to vector<16x64xf32>
    %264 = arith.mulf %263, %261 : vector<16x64xf32>
    %cst_74 = arith.constant dense<0.000000e+00> : vector<64xf32>
    %265 = vector.multi_reduction <add>, %264, %cst_74 [0] : vector<16x64xf32> to vector<64xf32>
    %266 = vector.shape_cast %265 : vector<64xf32> to vector<1x64xf32>
    %c12_i32 = arith.constant 12 : i32
    %267 = arith.addi %67, %c12_i32 : i32
    %268 = arith.index_cast %267 : i32 to index
    %c0_75 = arith.constant 0 : index
    %269 = vector.load %arg19[%268, %c0_75] : memref<16x64xf32, #tpu.memory_space<vmem>>, vector<1x64xf32>
    tpu.vector_store %arg19[%268, %c0_75], %266 {strides = array<i32>} : memref<16x64xf32, #tpu.memory_space<vmem>>, vector<1x64xf32>,
    %270 = vector.extract_strided_slice %82 {offsets = [13, 0, 0], sizes = [1, 16, 64], strides = [1, 1, 1]} : vector<16x16x64xf32> to vector<1x16x64xf32>
    %271 = vector.shape_cast %270 : vector<1x16x64xf32> to vector<16x64xf32>
    %272 = arith.mulf %271, %261 : vector<16x64xf32>
    %273 = vector.extract_strided_slice %87 {offsets = [13, 0, 0], sizes = [1, 16, 64], strides = [1, 1, 1]} : vector<16x16x64xf32> to vector<1x16x64xf32>
    %274 = vector.shape_cast %273 : vector<1x16x64xf32> to vector<16x64xf32>
    %275 = arith.addf %272, %274 : vector<16x64xf32>
    %276 = vector.extract_strided_slice %77 {offsets = [0, 13], sizes = [16, 1], strides = [1, 1]} : vector<16x16xf32> to vector<16x1xf32>
    %277 = vector.broadcast %276 : vector<16x1xf32> to vector<16x64xf32>
    %278 = arith.mulf %277, %275 : vector<16x64xf32>
    %cst_76 = arith.constant dense<0.000000e+00> : vector<64xf32>
    %279 = vector.multi_reduction <add>, %278, %cst_76 [0] : vector<16x64xf32> to vector<64xf32>
    %280 = vector.shape_cast %279 : vector<64xf32> to vector<1x64xf32>
    %c13_i32 = arith.constant 13 : i32
    %281 = arith.addi %67, %c13_i32 : i32
    %282 = arith.index_cast %281 : i32 to index
    %c0_77 = arith.constant 0 : index
    %283 = vector.load %arg19[%282, %c0_77] : memref<16x64xf32, #tpu.memory_space<vmem>>, vector<1x64xf32>
    tpu.vector_store %arg19[%282, %c0_77], %280 {strides = array<i32>} : memref<16x64xf32, #tpu.memory_space<vmem>>, vector<1x64xf32>,
    %284 = vector.extract_strided_slice %82 {offsets = [14, 0, 0], sizes = [1, 16, 64], strides = [1, 1, 1]} : vector<16x16x64xf32> to vector<1x16x64xf32>
    %285 = vector.shape_cast %284 : vector<1x16x64xf32> to vector<16x64xf32>
    %286 = arith.mulf %285, %275 : vector<16x64xf32>
    %287 = vector.extract_strided_slice %87 {offsets = [14, 0, 0], sizes = [1, 16, 64], strides = [1, 1, 1]} : vector<16x16x64xf32> to vector<1x16x64xf32>
    %288 = vector.shape_cast %287 : vector<1x16x64xf32> to vector<16x64xf32>
    %289 = arith.addf %286, %288 : vector<16x64xf32>
    %290 = vector.extract_strided_slice %77 {offsets = [0, 14], sizes = [16, 1], strides = [1, 1]} : vector<16x16xf32> to vector<16x1xf32>
    %291 = vector.broadcast %290 : vector<16x1xf32> to vector<16x64xf32>
    %292 = arith.mulf %291, %289 : vector<16x64xf32>
    %cst_78 = arith.constant dense<0.000000e+00> : vector<64xf32>
    %293 = vector.multi_reduction <add>, %292, %cst_78 [0] : vector<16x64xf32> to vector<64xf32>
    %294 = vector.shape_cast %293 : vector<64xf32> to vector<1x64xf32>
    %c14_i32 = arith.constant 14 : i32
    %295 = arith.addi %67, %c14_i32 : i32
    %296 = arith.index_cast %295 : i32 to index
    %c0_79 = arith.constant 0 : index
    %297 = vector.load %arg19[%296, %c0_79] : memref<16x64xf32, #tpu.memory_space<vmem>>, vector<1x64xf32>
    tpu.vector_store %arg19[%296, %c0_79], %294 {strides = array<i32>} : memref<16x64xf32, #tpu.memory_space<vmem>>, vector<1x64xf32>,
    %298 = vector.extract_strided_slice %82 {offsets = [15, 0, 0], sizes = [1, 16, 64], strides = [1, 1, 1]} : vector<16x16x64xf32> to vector<1x16x64xf32>
    %299 = vector.shape_cast %298 : vector<1x16x64xf32> to vector<16x64xf32>
    %300 = arith.mulf %299, %289 : vector<16x64xf32>
    %301 = vector.extract_strided_slice %87 {offsets = [15, 0, 0], sizes = [1, 16, 64], strides = [1, 1, 1]} : vector<16x16x64xf32> to vector<1x16x64xf32>
    %302 = vector.shape_cast %301 : vector<1x16x64xf32> to vector<16x64xf32>
    %303 = arith.addf %300, %302 : vector<16x64xf32>
    %304 = vector.extract_strided_slice %77 {offsets = [0, 15], sizes = [16, 1], strides = [1, 1]} : vector<16x16xf32> to vector<16x1xf32>
    %305 = vector.broadcast %304 : vector<16x1xf32> to vector<16x64xf32>
    %306 = arith.mulf %305, %303 : vector<16x64xf32>
    %cst_80 = arith.constant dense<0.000000e+00> : vector<64xf32>
    %307 = vector.multi_reduction <add>, %306, %cst_80 [0] : vector<16x64xf32> to vector<64xf32>
    %308 = vector.shape_cast %307 : vector<64xf32> to vector<1x64xf32>
    %c15_i32 = arith.constant 15 : i32
    %309 = arith.addi %67, %c15_i32 : i32
    %310 = arith.index_cast %309 : i32 to index
    %c0_81 = arith.constant 0 : index
    %311 = vector.load %arg19[%310, %c0_81] : memref<16x64xf32, #tpu.memory_space<vmem>>, vector<1x64xf32>
    tpu.vector_store %arg19[%310, %c0_81], %308 {strides = array<i32>} : memref<16x64xf32, #tpu.memory_space<vmem>>, vector<1x64xf32>,
    %c1_i32_82 = arith.constant 1 : i32
    %c0_83 = arith.constant 0 : index
    %c0_84 = arith.constant 0 : index
    %312 = vector.load %arg20[%c0_83, %c0_84] : memref<16x64xf32, #tpu.memory_space<vmem>>, vector<16x64xf32>
    tpu.vector_store %arg20[%c0_83, %c0_84], %303 {strides = array<i32>} : memref<16x64xf32, #tpu.memory_space<vmem>>, vector<16x64xf32>,
    %c0_85 = arith.constant 0 : index
    %c0_86 = arith.constant 0 : index
    %c0_87 = arith.constant 0 : index
    %313 = vector.load %arg2[%c0_85, %c0_86, %c0_87] : memref<1x16x32xf32, #tpu.memory_space<vmem>>, vector<1x16x32xf32>
    %314 = vector.shape_cast %313 : vector<1x16x32xf32> to vector<16x32xf32>
    %c0_88 = arith.constant 0 : index
    %c0_89 = arith.constant 0 : index
    %315 = vector.load %arg4[%c0_88, %c0_89] : memref<32x64xf32, #tpu.memory_space<vmem>>, vector<32x64xf32>
    %cst_90 = arith.constant dense<0.000000e+00> : vector<16x64xf32>
    %316 = tpu.matmul %314, %315, %cst_90 {dimension_numbers = #tpu.dot_dimension_numbers<[1], [0], [0], [1], [0, 0, 1, 1], [], []>} : vector<16x32xf32>, vector<32x64xf32>, vector<16x64xf32> -> vector<16x64xf32>
    %c0_91 = arith.constant 0 : index
    %c0_92 = arith.constant 0 : index
    %317 = vector.load %arg19[%c0_91, %c0_92] : memref<16x64xf32, #tpu.memory_space<vmem>>, vector<16x64xf32>
    %c0_93 = arith.constant 0 : index
    %c0_94 = arith.constant 0 : index
    %318 = vector.load %arg11[%c0_93, %c0_94] : memref<1x64xf32, #tpu.memory_space<vmem>>, vector<1x64xf32>
    %c0_95 = arith.constant 0 : index
    %c0_96 = arith.constant 0 : index
    %319 = vector.load %arg16[%c0_95, %c0_96] : memref<16x64xf32, #tpu.memory_space<vmem>>, vector<16x64xf32>
    %320 = vector.broadcast %318 : vector<1x64xf32> to vector<16x64xf32>
    %321 = arith.mulf %320, %319 : vector<16x64xf32>
    %322 = arith.addf %317, %321 : vector<16x64xf32>
    %323 = arith.negf %316 : vector<16x64xf32>
    %324 = math.exp %323 : vector<16x64xf32>
    %cst_97 = arith.constant 1.000000e+00 : f32
    %325 = vector.broadcast %cst_97 : f32 to vector<16x64xf32>
    %326 = arith.addf %325, %324 : vector<16x64xf32>
    %327 = arith.divf %325, %326 : vector<16x64xf32>
    %328 = arith.mulf %316, %327 : vector<16x64xf32>
    %329 = arith.mulf %322, %328 : vector<16x64xf32>
    %c0_98 = arith.constant 0 : index
    %c0_99 = arith.constant 0 : index
    %330 = vector.load %arg12[%c0_98, %c0_99] : memref<64x32xf32, #tpu.memory_space<vmem>>, vector<64x32xf32>
    %cst_100 = arith.constant dense<0.000000e+00> : vector<16x32xf32>
    %331 = tpu.matmul %329, %330, %cst_100 {dimension_numbers = #tpu.dot_dimension_numbers<[1], [0], [0], [1], [0, 0, 1, 1], [], []>} : vector<16x64xf32>, vector<64x32xf32>, vector<16x32xf32> -> vector<16x32xf32>
    %c0_101 = arith.constant 0 : index
    %c0_102 = arith.constant 0 : index
    %c0_103 = arith.constant 0 : index
    %332 = vector.load %arg13[%c0_101, %c0_102, %c0_103] : memref<1x16x32xf32, #tpu.memory_space<vmem>>, vector<1x16x32xf32>
    %333 = vector.shape_cast %332 : vector<1x16x32xf32> to vector<16x32xf32>
    %334 = vector.shape_cast %331 : vector<16x32xf32> to vector<1x16x32xf32>
    tpu.vector_store %arg13[%c0_101, %c0_102, %c0_103], %334 {strides = array<i32>} : memref<1x16x32xf32, #tpu.memory_space<vmem>>, vector<1x16x32xf32>,
    return
  }
  func.func @transform_0(%arg0: i32, %arg1: i32) -> (i32, i32, i32) {
    %c0_i32 = arith.constant 0 : i32
    %c0_i32_0 = arith.constant 0 : i32
    return %arg0, %arg1, %c0_i32 : i32, i32, i32
  }
  func.func @transform_1(%arg0: i32, %arg1: i32) -> (i32, i32) {
    %c0_i32 = arith.constant 0 : i32
    %c0_i32_0 = arith.constant 0 : i32
    %c0_i32_1 = arith.constant 0 : i32
    return %c0_i32, %c0_i32_0 : i32, i32
  }
  func.func @transform_2(%arg0: i32, %arg1: i32) -> (i32, i32) {
    %c0_i32 = arith.constant 0 : i32
    %c0_i32_0 = arith.constant 0 : i32
    %c0_i32_1 = arith.constant 0 : i32
    return %c0_i32, %c0_i32_0 : i32, i32
  }
  func.func @transform_3(%arg0: i32, %arg1: i32) -> (i32, i32) {
    %c0_i32 = arith.constant 0 : i32
    %c0_i32_0 = arith.constant 0 : i32
    %c0_i32_1 = arith.constant 0 : i32
    return %c0_i32, %c0_i32_0 : i32, i32
  }
  func.func @transform_4(%arg0: i32, %arg1: i32) -> (i32, i32) {
    %c0_i32 = arith.constant 0 : i32
    %c0_i32_0 = arith.constant 0 : i32
    %c0_i32_1 = arith.constant 0 : i32
    return %c0_i32, %c0_i32_0 : i32, i32
  }
  func.func @transform_5(%arg0: i32, %arg1: i32) -> (i32, i32) {
    %c0_i32 = arith.constant 0 : i32
    %c0_i32_0 = arith.constant 0 : i32
    %c0_i32_1 = arith.constant 0 : i32
    return %c0_i32, %c0_i32_0 : i32, i32
  }
  func.func @transform_6(%arg0: i32, %arg1: i32) -> (i32, i32) {
    %c0_i32 = arith.constant 0 : i32
    %c0_i32_0 = arith.constant 0 : i32
    %c0_i32_1 = arith.constant 0 : i32
    return %c0_i32, %c0_i32_0 : i32, i32
  }
  func.func @transform_7(%arg0: i32, %arg1: i32) -> (i32, i32) {
    %c0_i32 = arith.constant 0 : i32
    %c0_i32_0 = arith.constant 0 : i32
    %c0_i32_1 = arith.constant 0 : i32
    return %c0_i32, %c0_i32_0 : i32, i32
  }
  func.func @transform_8(%arg0: i32, %arg1: i32) -> (i32, i32) {
    %c0_i32 = arith.constant 0 : i32
    %c0_i32_0 = arith.constant 0 : i32
    %c0_i32_1 = arith.constant 0 : i32
    return %c0_i32, %c0_i32_0 : i32, i32
  }
  func.func @transform_9(%arg0: i32, %arg1: i32) -> (i32, i32) {
    %c0_i32 = arith.constant 0 : i32
    %c0_i32_0 = arith.constant 0 : i32
    %c0_i32_1 = arith.constant 0 : i32
    return %c0_i32, %c0_i32_0 : i32, i32
  }
  func.func @transform_10(%arg0: i32, %arg1: i32) -> (i32, i32) {
    %c0_i32 = arith.constant 0 : i32
    %c0_i32_0 = arith.constant 0 : i32
    %c0_i32_1 = arith.constant 0 : i32
    return %c0_i32, %c0_i32_0 : i32, i32
  }
  func.func @transform_11(%arg0: i32, %arg1: i32) -> (i32, i32, i32) {
    %c0_i32 = arith.constant 0 : i32
    %c0_i32_0 = arith.constant 0 : i32
    return %arg0, %arg1, %c0_i32 : i32, i32, i32
  }
}

</mosaic_0001>

<llo_original>
// kernel: tpu_custom_call.1
$region0: #{tpu_custom_call.1}
  #allocation0 [shape = 'u32[]', space=smem, size = 0x4, offset = 0x4, fixed_abs, tag = 'smem constant byte address 0x4 - core index']
  #allocation1 [shape = 'u32[144,128]{1,0:T(1,128)}', space=vmem, size = 0x12000, scoped, tag = 'internal scratch']
  #allocation2 [shape = 'f32[24,64]{1,0:T(8,128)}', space=vmem, size = 0x3000, scoped, tag = 'scratch operand']
  #allocation3 [shape = 'f32[16,64]{1,0:T(8,128)}', space=vmem, size = 0x2000, scoped, tag = 'scratch operand']
  #allocation4 [shape = 'f32[16,64]{1,0:T(8,128)}', space=vmem, size = 0x2000, scoped, tag = 'scratch operand']
  #allocation5 [shape = 'f32[16,16]{1,0:T(8,128)}', space=vmem, size = 0x2000, scoped, tag = 'scratch operand']
  #allocation6 [shape = 'f32[16,16]{1,0:T(8,128)}', space=vmem, size = 0x2000, scoped, tag = 'scratch operand']
  #allocation7 [shape = 'f32[16,64]{1,0:T(8,128)}', space=vmem, size = 0x2000, scoped, tag = 'scratch operand']
  #allocation8 [shape = 'f32[16,64]{1,0:T(8,128)}', space=vmem, size = 0x2000, scoped, tag = 'scratch operand']
  %s0 = inlined_call_operand.vmem [shape: f32[2,16,32], index: 0, kind: input, shape index: {}]
  %s1 = inlined_call_operand.vmem [shape: f32[32,64], index: 1, kind: input, shape index: {}]
  %s2 = inlined_call_operand.vmem [shape: f32[32,64], index: 2, kind: input, shape index: {}]
  %s3 = inlined_call_operand.vmem [shape: f32[4,64], index: 3, kind: input, shape index: {}]
  %s4 = inlined_call_operand.vmem [shape: f32[1,64], index: 4, kind: input, shape index: {}]
  %s5 = inlined_call_operand.hbm [shape: f32[64,384], index: 5, kind: input, shape index: {}]
  %s6 = inlined_call_operand.vmem [shape: f32[2,64], index: 6, kind: input, shape index: {}]
  %s7 = inlined_call_operand.vmem [shape: f32[1,64], index: 7, kind: input, shape index: {}]
  %s8 = inlined_call_operand.hbm [shape: f32[16,64], index: 8, kind: input, shape index: {}]
  %s9 = inlined_call_operand.vmem [shape: f32[1,64], index: 9, kind: input, shape index: {}]
  %s10 = inlined_call_operand.vmem [shape: f32[64,32], index: 10, kind: input, shape index: {}]
  %s11 = inlined_call_operand.hbm [shape: f32[2,16,32], index: 11, kind: output, shape index: {}]
  %s12 = sld [smem:[#allocation0]]
  $region93: #{tpu_custom_call.1} parent=0
    _
  %s14 = ssub.s32 1, %s12
  %s15 = scalar_select 0, %s14, %s12
  $region1: #{tpu_custom_call.1} parent=0
    #allocation9 [shape = 'u8[98304]{0}', space=vmem, size = 0x18000, scoped, tag = 'input window, operand 5, single buffered']
    #allocation10 [shape = 's32[2]{0}', space=sflag, size = 0x8, scoped, tag = 'scoped memory for tpu_custom_call.1']
    #allocation11 [shape = 's32[2]{0}', space=sflag, size = 0x8, scoped, tag = 'scoped memory for tpu_custom_call.1']
    #allocation12 [shape = 'u8[8192]{0}', space=vmem, size = 0x2000, scoped, tag = 'input window, operand 8, single buffered']
    #allocation13 [shape = 's32[1]{0}', space=sflag, size = 0x4, scoped, tag = 'scoped memory for tpu_custom_call.1']
    #allocation14 [shape = 'u8[16384]{0}', space=vmem, size = 0x4000, scoped, tag = 'output window, operand 0']
    %16 = vsyncpa [#allocation10], 0
    %17 = vsyncpa [#allocation13], 0
    %18 = vsyncpa [#allocation11], 0
    %s19 = scalar_lea.sflag [#allocation11], 1
    %20 = vsyncpa %s19, 0
    loop: start=0, step=1, limit=4
    $region2: #{tpu_custom_call.1} parent=1 // loop_pre_header
      _
    $region3: #{tpu_custom_call.1} parent=1 // loop_header
      %s22 = sphi 0, %s26
      %p23 = scmp.ge.s32.totalorder %s22, 4
      %s29 = sphi 0, %s41
      %s30 = sphi 0, %s37
      %s31 = sphi 0, %s29
      %s32 = sphi 0, %s30
      %s33 = sphi 0, %s31
      %s34 = sphi 0, %s32
      %s46 = sphi 0, %s48
      %s49 = sphi 0, %s46
      %s50 = sphi 0, %s49
      %s66 = sphi 0, %s50
      %s70 = sphi 0, %s70
      %s72 = sphi 0, %s70
      %s73 = sphi 0, %s72
      %s87 = sphi 0, %s73
      %s91 = sphi 0, %s91
      %s93 = sphi 0, %s91
      %s94 = sphi 0, %s93
      %s108 = sphi 0, %s94
      %s112 = sphi 0, %s112
      %s114 = sphi 0, %s112
      %s115 = sphi 0, %s114
      %s129 = sphi 0, %s115
      %s133 = sphi 0, %s133
      %s135 = sphi 0, %s133
      %s136 = sphi 0, %s135
      %s150 = sphi 0, %s136
      %s154 = sphi 0, %s154
      %s156 = sphi 0, %s154
      %s157 = sphi 0, %s156
      %s171 = sphi 0, %s157
      %s175 = sphi 0, %s175
      %s177 = sphi 0, %s175
      %s178 = sphi 0, %s177
      %s192 = sphi 0, %s178
      %s196 = sphi 0, %s196
      %s198 = sphi 0, %s196
      %s199 = sphi 0, %s198
      %s213 = sphi 0, %s199
      %s217 = sphi 0, %s217
      %s219 = sphi 0, %s217
      %s220 = sphi 0, %s219
      %s234 = sphi 0, %s220
      %s238 = sphi 0, %s238
      %s240 = sphi 0, %s238
      %s241 = sphi 0, %s240
      %s255 = sphi 0, %s241
      %s259 = sphi 0, %s259
      %s261 = sphi 0, %s259
      %s262 = sphi 0, %s261
      %s276 = sphi 0, %s262
      %s284 = sphi 0, %s286
      %s287 = sphi 0, %s284
      %s288 = sphi 0, %s287
      %s304 = sphi 0, %s288
    $region4: #{tpu_custom_call.1} parent=1 // loop_header_branch
      %25 = sbr.rel (%p23) target = $region8
    $region5: #{tpu_custom_call.1} parent=1 // loop_body
      %s27 = ssub.s32 %s22, 1
      %s28 = ssub.s32 %s22, 2
      %s35 = sadd.s32 1, %s30
      %p36 = scmp.ge.s32.totalorder %s35, 1
      %s37 = scalar_select %p36, 0, %s35
      %s38 = sadd.s32 1, %s29
      %s39 = scalar_select %p36, %s38, %s29
      %p40 = scmp.ge.s32.totalorder %s39, 2
      %s41 = scalar_select %p40, 0, %s39
      %s42 = ssub.s32 %s29, %s41
      %s43 = ssub.s32 %s30, %s37
      %s44 = sor.u32 %s42, %s43
      %p45 = scmp.eq.s32.totalorder %s44, 0
      %s47 = sadd.s32 %s46, 1
      %s48 = scalar_select %p45, %s46, %s47
      %p51 = pneg %p45
      %p52 = scmp.eq.s32.totalorder %s22, 1
      %p53 = por %p51, %p52
      %p54 = scmp.ne.s32.totalorder %s46, %s49
      %p55 = scmp.eq.s32.totalorder %s22, 0
      %p56 = por %p54, %p55
      %p57 = scmp.ne.s32.totalorder %s46, %s49
      %p58 = scmp.eq.s32.totalorder %s27, 1
      %p59 = por %p57, %p58
      %p60 = scmp.ne.s32.totalorder %s49, %s50
      %p61 = scmp.eq.s32.totalorder %s27, 0
      %p62 = por %p60, %p61
      %p63 = scmp.ne.s32.totalorder %s49, %s50
      %p64 = scmp.eq.s32.totalorder %s28, 1
      %p65 = por %p63, %p64
      %p67 = scmp.ne.s32.totalorder %s50, %s66
      %p68 = scmp.eq.s32.totalorder %s28, 0
      %p69 = por %p67, %p68
      %s71 = sadd.s32 %s70, 1
      %p74 = scmp.eq.s32.totalorder %s22, 1
      %p75 = scmp.ne.s32.totalorder %s70, %s72
      %p76 = scmp.eq.s32.totalorder %s22, 0
      %p77 = por %p75, %p76
      %p78 = scmp.ne.s32.totalorder %s70, %s72
      %p79 = scmp.eq.s32.totalorder %s27, 1
      %p80 = por %p78, %p79
      %p81 = scmp.ne.s32.totalorder %s72, %s73
      %p82 = scmp.eq.s32.totalorder %s27, 0
      %p83 = por %p81, %p82
      %p84 = scmp.ne.s32.totalorder %s72, %s73
      %p85 = scmp.eq.s32.totalorder %s28, 1
      %p86 = por %p84, %p85
      %p88 = scmp.ne.s32.totalorder %s73, %s87
      %p89 = scmp.eq.s32.totalorder %s28, 0
      %p90 = por %p88, %p89
      %s92 = sadd.s32 %s91, 1
      %p95 = scmp.eq.s32.totalorder %s22, 1
      %p96 = scmp.ne.s32.totalorder %s91, %s93
      %p97 = scmp.eq.s32.totalorder %s22, 0
      %p98 = por %p96, %p97
      %p99 = scmp.ne.s32.totalorder %s91, %s93
      %p100 = scmp.eq.s32.totalorder %s27, 1
      %p101 = por %p99, %p100
      %p102 = scmp.ne.s32.totalorder %s93, %s94
      %p103 = scmp.eq.s32.totalorder %s27, 0
      %p104 = por %p102, %p103
      %p105 = scmp.ne.s32.totalorder %s93, %s94
      %p106 = scmp.eq.s32.totalorder %s28, 1
      %p107 = por %p105, %p106
      %p109 = scmp.ne.s32.totalorder %s94, %s108
      %p110 = scmp.eq.s32.totalorder %s28, 0
      %p111 = por %p109, %p110
      %s113 = sadd.s32 %s112, 1
      %p116 = scmp.eq.s32.totalorder %s22, 1
      %p117 = scmp.ne.s32.totalorder %s112, %s114
      %p118 = scmp.eq.s32.totalorder %s22, 0
      %p119 = por %p117, %p118
      %p120 = scmp.ne.s32.totalorder %s112, %s114
      %p121 = scmp.eq.s32.totalorder %s27, 1
      %p122 = por %p120, %p121
      %p123 = scmp.ne.s32.totalorder %s114, %s115
      %p124 = scmp.eq.s32.totalorder %s27, 0
      %p125 = por %p123, %p124
      %p126 = scmp.ne.s32.totalorder %s114, %s115
      %p127 = scmp.eq.s32.totalorder %s28, 1
      %p128 = por %p126, %p127
      %p130 = scmp.ne.s32.totalorder %s115, %s129
      %p131 = scmp.eq.s32.totalorder %s28, 0
      %p132 = por %p130, %p131
      %s134 = sadd.s32 %s133, 1
      %p137 = scmp.eq.s32.totalorder %s22, 1
      %p138 = scmp.ne.s32.totalorder %s133, %s135
      %p139 = scmp.eq.s32.totalorder %s22, 0
      %p140 = por %p138, %p139
      %p141 = scmp.ne.s32.totalorder %s133, %s135
      %p142 = scmp.eq.s32.totalorder %s27, 1
      %p143 = por %p141, %p142
      %p144 = scmp.ne.s32.totalorder %s135, %s136
      %p145 = scmp.eq.s32.totalorder %s27, 0
      %p146 = por %p144, %p145
      %p147 = scmp.ne.s32.totalorder %s135, %s136
      %p148 = scmp.eq.s32.totalorder %s28, 1
      %p149 = por %p147, %p148
      %p151 = scmp.ne.s32.totalorder %s136, %s150
      %p152 = scmp.eq.s32.totalorder %s28, 0
      %p153 = por %p151, %p152
      %s155 = sadd.s32 %s154, 1
      %p158 = scmp.eq.s32.totalorder %s22, 1
      %p159 = scmp.ne.s32.totalorder %s154, %s156
      %p160 = scmp.eq.s32.totalorder %s22, 0
      %p161 = por %p159, %p160
      %p162 = scmp.ne.s32.totalorder %s154, %s156
      %p163 = scmp.eq.s32.totalorder %s27, 1
      %p164 = por %p162, %p163
      %p165 = scmp.ne.s32.totalorder %s156, %s157
      %p166 = scmp.eq.s32.totalorder %s27, 0
      %p167 = por %p165, %p166
      %p168 = scmp.ne.s32.totalorder %s156, %s157
      %p169 = scmp.eq.s32.totalorder %s28, 1
      %p170 = por %p168, %p169
      %p172 = scmp.ne.s32.totalorder %s157, %s171
      %p173 = scmp.eq.s32.totalorder %s28, 0
      %p174 = por %p172, %p173
      %s176 = sadd.s32 %s175, 1
      %p179 = scmp.eq.s32.totalorder %s22, 1
      %p180 = scmp.ne.s32.totalorder %s175, %s177
      %p181 = scmp.eq.s32.totalorder %s22, 0
      %p182 = por %p180, %p181
      %p183 = scmp.ne.s32.totalorder %s175, %s177
      %p184 = scmp.eq.s32.totalorder %s27, 1
      %p185 = por %p183, %p184
      %p186 = scmp.ne.s32.totalorder %s177, %s178
      %p187 = scmp.eq.s32.totalorder %s27, 0
      %p188 = por %p186, %p187
      %p189 = scmp.ne.s32.totalorder %s177, %s178
      %p190 = scmp.eq.s32.totalorder %s28, 1
      %p191 = por %p189, %p190
      %p193 = scmp.ne.s32.totalorder %s178, %s192
      %p194 = scmp.eq.s32.totalorder %s28, 0
      %p195 = por %p193, %p194
      %s197 = sadd.s32 %s196, 1
      %p200 = scmp.eq.s32.totalorder %s22, 1
      %p201 = scmp.ne.s32.totalorder %s196, %s198
      %p202 = scmp.eq.s32.totalorder %s22, 0
      %p203 = por %p201, %p202
      %p204 = scmp.ne.s32.totalorder %s196, %s198
      %p205 = scmp.eq.s32.totalorder %s27, 1
      %p206 = por %p204, %p205
      %p207 = scmp.ne.s32.totalorder %s198, %s199
      %p208 = scmp.eq.s32.totalorder %s27, 0
      %p209 = por %p207, %p208
      %p210 = scmp.ne.s32.totalorder %s198, %s199
      %p211 = scmp.eq.s32.totalorder %s28, 1
      %p212 = por %p210, %p211
      %p214 = scmp.ne.s32.totalorder %s199, %s213
      %p215 = scmp.eq.s32.totalorder %s28, 0
      %p216 = por %p214, %p215
      %s218 = sadd.s32 %s217, 1
      %p221 = scmp.eq.s32.totalorder %s22, 1
      %p222 = scmp.ne.s32.totalorder %s217, %s219
      %p223 = scmp.eq.s32.totalorder %s22, 0
      %p224 = por %p222, %p223
      %p225 = scmp.ne.s32.totalorder %s217, %s219
      %p226 = scmp.eq.s32.totalorder %s27, 1
      %p227 = por %p225, %p226
      %p228 = scmp.ne.s32.totalorder %s219, %s220
      %p229 = scmp.eq.s32.totalorder %s27, 0
      %p230 = por %p228, %p229
      %p231 = scmp.ne.s32.totalorder %s219, %s220
      %p232 = scmp.eq.s32.totalorder %s28, 1
      %p233 = por %p231, %p232
      %p235 = scmp.ne.s32.totalorder %s220, %s234
      %p236 = scmp.eq.s32.totalorder %s28, 0
      %p237 = por %p235, %p236
      %s239 = sadd.s32 %s238, 1
      %p242 = scmp.eq.s32.totalorder %s22, 1
      %p243 = scmp.ne.s32.totalorder %s238, %s240
      %p244 = scmp.eq.s32.totalorder %s22, 0
      %p245 = por %p243, %p244
      %p246 = scmp.ne.s32.totalorder %s238, %s240
      %p247 = scmp.eq.s32.totalorder %s27, 1
      %p248 = por %p246, %p247
      %p249 = scmp.ne.s32.totalorder %s240, %s241
      %p250 = scmp.eq.s32.totalorder %s27, 0
      %p251 = por %p249, %p250
      %p252 = scmp.ne.s32.totalorder %s240, %s241
      %p253 = scmp.eq.s32.totalorder %s28, 1
      %p254 = por %p252, %p253
      %p256 = scmp.ne.s32.totalorder %s241, %s255
      %p257 = scmp.eq.s32.totalorder %s28, 0
      %p258 = por %p256, %p257
      %s260 = sadd.s32 %s259, 1
      %p263 = scmp.eq.s32.totalorder %s22, 1
      %p264 = scmp.ne.s32.totalorder %s259, %s261
      %p265 = scmp.eq.s32.totalorder %s22, 0
      %p266 = por %p264, %p265
      %p267 = scmp.ne.s32.totalorder %s259, %s261
      %p268 = scmp.eq.s32.totalorder %s27, 1
      %p269 = por %p267, %p268
      %p270 = scmp.ne.s32.totalorder %s261, %s262
      %p271 = scmp.eq.s32.totalorder %s27, 0
      %p272 = por %p270, %p271
      %p273 = scmp.ne.s32.totalorder %s261, %s262
      %p274 = scmp.eq.s32.totalorder %s28, 1
      %p275 = por %p273, %p274
      %p277 = scmp.ne.s32.totalorder %s262, %s276
      %p278 = scmp.eq.s32.totalorder %s28, 0
      %p279 = por %p277, %p278
      %s280 = ssub.s32 %s29, %s41
      %s281 = ssub.s32 %s30, %s37
      %s282 = sor.u32 %s280, %s281
      %p283 = scmp.eq.s32.totalorder %s282, 0
      %s285 = sadd.s32 %s284, 1
      %s286 = scalar_select %p283, %s284, %s285
      %p289 = pneg %p283
      %p290 = scmp.eq.s32.totalorder %s22, 1
      %p291 = por %p289, %p290
      %p292 = scmp.ne.s32.totalorder %s284, %s287
      %p293 = scmp.eq.s32.totalorder %s22, 0
      %p294 = por %p292, %p293
      %p295 = scmp.ne.s32.totalorder %s284, %s287
      %p296 = scmp.eq.s32.totalorder %s27, 1
      %p297 = por %p295, %p296
      %p298 = scmp.ne.s32.totalorder %s287, %s288
      %p299 = scmp.eq.s32.totalorder %s27, 0
      %p300 = por %p298, %p299
      %p301 = scmp.ne.s32.totalorder %s287, %s288
      %p302 = scmp.eq.s32.totalorder %s28, 1
      %p303 = por %p301, %p302
      %p305 = scmp.ne.s32.totalorder %s288, %s304
      %p306 = scmp.eq.s32.totalorder %s28, 0
      %p307 = por %p305, %p306
      %p308 = scmp.le.s32.totalorder 1, %s22
      %p309 = scmp.lt.s32.totalorder %s22, 3
      %p310 = pnand %p308, %p309
      %p311 = pneg %p310
      // Predicated region
      $region9: #{tpu_custom_call.1} parent=5 // pred_check
        _
      $region10: #{tpu_custom_call.1} parent=5 // pred_check_branch
        %313 = sbr.rel (%p310) target = $region12
      $region11: #{tpu_custom_call.1} parent=5 // pred_region
        %s314 = ssub.s32 %s22, 1
        // Predicated region
        $region13: #{tpu_custom_call.1} parent=11 // pred_check
          %p315 = pneg %p83
        $region14: #{tpu_custom_call.1} parent=11 // pred_check_branch
          %317 = sbr.rel (%p315) target = $region16
        $region15: #{tpu_custom_call.1} parent=11 // pred_region
          _
        $region16: #{tpu_custom_call.1} parent=11 // pred_fallthru
          _
        // Predicated region
        $region17: #{tpu_custom_call.1} parent=11 // pred_check
          %p318 = pneg %p104
        $region18: #{tpu_custom_call.1} parent=11 // pred_check_branch
          %320 = sbr.rel (%p318) target = $region20
        $region19: #{tpu_custom_call.1} parent=11 // pred_region
          _
        $region20: #{tpu_custom_call.1} parent=11 // pred_fallthru
          _
        // Predicated region
        $region21: #{tpu_custom_call.1} parent=11 // pred_check
          %p321 = pneg %p125
        $region22: #{tpu_custom_call.1} parent=11 // pred_check_branch
          %323 = sbr.rel (%p321) target = $region24
        $region23: #{tpu_custom_call.1} parent=11 // pred_region
          _
        $region24: #{tpu_custom_call.1} parent=11 // pred_fallthru
          _
        // Predicated region
        $region25: #{tpu_custom_call.1} parent=11 // pred_check
          %p324 = pneg %p146
        $region26: #{tpu_custom_call.1} parent=11 // pred_check_branch
          %326 = sbr.rel (%p324) target = $region28
        $region27: #{tpu_custom_call.1} parent=11 // pred_region
          _
        $region28: #{tpu_custom_call.1} parent=11 // pred_fallthru
          _
        // Predicated region
        $region29: #{tpu_custom_call.1} parent=11 // pred_check
          %p327 = pneg %p167
        $region30: #{tpu_custom_call.1} parent=11 // pred_check_branch
          %329 = sbr.rel (%p327) target = $region32
        $region31: #{tpu_custom_call.1} parent=11 // pred_region
          %s331 = ssub.s32 3072, 3072
          %332 = vsyncadd [#allocation10], %s331
          %s333 = sshll.u32 [#allocation9], 4
          %s334 = int_to_ptr.vmem [resolvable:$true] %s333
          %339 = dma.hbm_to_vmem [thread:$0]  %s5, 3072, %s334, [#allocation10], 384, 384, 24
        $region32: #{tpu_custom_call.1} parent=11 // pred_fallthru
          _
        // Predicated region
        $region33: #{tpu_custom_call.1} parent=11 // pred_check
          %p340 = pneg %p188
        $region34: #{tpu_custom_call.1} parent=11 // pred_check_branch
          %342 = sbr.rel (%p340) target = $region36
        $region35: #{tpu_custom_call.1} parent=11 // pred_region
          _
        $region36: #{tpu_custom_call.1} parent=11 // pred_fallthru
          _
        // Predicated region
        $region37: #{tpu_custom_call.1} parent=11 // pred_check
          %p343 = pneg %p209
        $region38: #{tpu_custom_call.1} parent=11 // pred_check_branch
          %345 = sbr.rel (%p343) target = $region40
        $region39: #{tpu_custom_call.1} parent=11 // pred_region
          _
        $region40: #{tpu_custom_call.1} parent=11 // pred_fallthru
          _
        // Predicated region
        $region41: #{tpu_custom_call.1} parent=11 // pred_check
          %p346 = pneg %p230
        $region42: #{tpu_custom_call.1} parent=11 // pred_check_branch
          %348 = sbr.rel (%p346) target = $region44
        $region43: #{tpu_custom_call.1} parent=11 // pred_region
          %s350 = ssub.s32 256, 256
          %351 = vsyncadd [#allocation13], %s350
          %s352 = sshll.u32 [#allocation12], 4
          %s353 = int_to_ptr.vmem [resolvable:$true] %s352
          %358 = dma.hbm_to_vmem [thread:$0]  %s8, 256, %s353, [#allocation13], 128, 128, 8
        $region44: #{tpu_custom_call.1} parent=11 // pred_fallthru
          _
        // Predicated region
        $region45: #{tpu_custom_call.1} parent=11 // pred_check
          %p359 = pneg %p251
        $region46: #{tpu_custom_call.1} parent=11 // pred_check_branch
          %361 = sbr.rel (%p359) target = $region48
        $region47: #{tpu_custom_call.1} parent=11 // pred_region
          _
        $region48: #{tpu_custom_call.1} parent=11 // pred_fallthru
          _
        // Predicated region
        $region49: #{tpu_custom_call.1} parent=11 // pred_check
          %p362 = pneg %p272
        $region50: #{tpu_custom_call.1} parent=11 // pred_check_branch
          %364 = sbr.rel (%p362) target = $region52
        $region51: #{tpu_custom_call.1} parent=11 // pred_region
          _
        $region52: #{tpu_custom_call.1} parent=11 // pred_fallthru
          _
      $region12: #{tpu_custom_call.1} parent=5 // pred_fallthru
        _
      %p365 = scmp.lt.s32.totalorder %s22, 2
      // Predicated region
      $region53: #{tpu_custom_call.1} parent=5 // pred_check
        %p366 = pneg %p365
      $region54: #{tpu_custom_call.1} parent=5 // pred_check_branch
        %368 = sbr.rel (%p366) target = $region56
      $region55: #{tpu_custom_call.1} parent=5 // pred_region
        // Predicated region
        $region57: #{tpu_custom_call.1} parent=55 // pred_check
          %p369 = pneg %p56
        $region58: #{tpu_custom_call.1} parent=55 // pred_check_branch
          %371 = sbr.rel (%p369) target = $region60
        $region59: #{tpu_custom_call.1} parent=55 // pred_region
          %s372 = smul.u32 2, %s30
          %p373 = scmp.lt.s32.totalorder %s29, 1
          %s374 = scalar_select %p373, %s29, 1
          %p375 = scmp.lt.s32.totalorder %s372, 1
          %s376 = scalar_select %p375, %s372, 1
          %s377 = smul.addr %s374, 2
          %s378 = sadd.s32 %s376, %s377
          %s379 = smul.addr %s378, 8
          %s380 = scalar_lea.vmem %s0, %s379
          %s381 = smul.u32 2, %s30
        $region60: #{tpu_custom_call.1} parent=55 // pred_fallthru
          _
      $region56: #{tpu_custom_call.1} parent=5 // pred_fallthru
        _
      %p382 = scmp.le.s32.totalorder 1, %s22
      %p383 = scmp.lt.s32.totalorder %s22, 3
      %p384 = pnand %p382, %p383
      %p385 = pneg %p384
      // Predicated region
      $region61: #{tpu_custom_call.1} parent=5 // pred_check
        _
      $region62: #{tpu_custom_call.1} parent=5 // pred_check_branch
        %387 = sbr.rel (%p384) target = $region64
      $region63: #{tpu_custom_call.1} parent=5 // pred_region
        %s388 = ssub.s32 %s22, 1
        // Predicated region
        $region65: #{tpu_custom_call.1} parent=63 // pred_check
          %p389 = pneg %p167
        $region66: #{tpu_custom_call.1} parent=63 // pred_check_branch
          %391 = sbr.rel (%p389) target = $region68
        $region67: #{tpu_custom_call.1} parent=63 // pred_region
          %392 = dma.done [#allocation10], 3072
        $region68: #{tpu_custom_call.1} parent=63 // pred_fallthru
          _
        // Predicated region
        $region69: #{tpu_custom_call.1} parent=63 // pred_check
          %p393 = pneg %p230
        $region70: #{tpu_custom_call.1} parent=63 // pred_check_branch
          %395 = sbr.rel (%p393) target = $region72
        $region71: #{tpu_custom_call.1} parent=63 // pred_region
          %396 = dma.done [#allocation13], 256
        $region72: #{tpu_custom_call.1} parent=63 // pred_fallthru
          _
        %s397 = smul.u32 2, %s32
        %p398 = scmp.lt.s32.totalorder %s31, 1
        %s399 = scalar_select %p398, %s31, 1
        %p400 = scmp.lt.s32.totalorder %s397, 1
        %s401 = scalar_select %p400, %s397, 1
        %s402 = smul.addr %s399, 2
        %s403 = sadd.s32 %s401, %s402
        %s404 = smul.addr %s403, 8
        %s405 = scalar_lea.vmem %s0, %s404
        %p406 = pneg %p62
        %p407 = pneg %p59
        %p408 = pneg %p83
        %p409 = pneg %p80
        %p410 = pneg %p104
        %p411 = pneg %p101
        %p412 = pneg %p125
        %p413 = pneg %p122
        %p414 = pneg %p146
        %p415 = pneg %p143
        %p416 = pneg %p167
        %p417 = pneg %p164
        %p418 = pneg %p188
        %p419 = pneg %p185
        %p420 = pneg %p209
        %p421 = pneg %p206
        %p422 = pneg %p230
        %p423 = pneg %p227
        %p424 = pneg %p251
        %p425 = pneg %p248
        %p426 = pneg %p272
        %p427 = pneg %p269
        %p428 = pneg %p300
        %p429 = pneg %p297
        %s430 = sand.u32 %s287, 1
        %s431 = scalar_lea.sflag [#allocation11], %s430
        %s432 = sand.u32 %s287, 1
        %s433 = smul.addr %s432, 16
        %s434 = scalar_lea.vmem [#allocation14], %s433
        %s435 = smul.u32 2, %s32
        %p436 = scmp.lt.s32.totalorder %s31, 1
        %s437 = scalar_select %p436, %s31, 1
        %p438 = scmp.lt.s32.totalorder %s435, 1
        %s439 = scalar_select %p438, %s435, 1
        %s440 = smul.addr %s437, 2
        %s441 = sadd.s32 %s439, %s440
        %s442 = smul.addr %s441, 8
        %s443 = scalar_lea.vmem %s0, %s442
        %s444 = smul.u32 2, %s32
        %s445 = smul.u32 2, %s32
        %p446 = scmp.eq.s32.totalorder %s32, 0
        // Predicated region
        $region73: #{tpu_custom_call.1} parent=63 // pred_check
          %p447 = pneg %p446
        $region74: #{tpu_custom_call.1} parent=63 // pred_check_branch
          %449 = sbr.rel (%p447) target = $region76
        $region75: #{tpu_custom_call.1} parent=63 // pred_region
          %vm450 = vcmask 523264
          %451 = vst.msk [vmem:[#allocation2] sm:$0xff] %vm450, 0.0
          %452 = vst.msk [vmem:[#allocation8] sm:$0xff] %vm450, 0.0
          %453 = vst.msk [vmem:[#allocation8 + $0x8] sm:$0xff] %vm450, 0.0
        $region76: #{tpu_custom_call.1} parent=63 // pred_fallthru
          _
        %p454 = scmp.gt.s32.totalorder %s32, 0
        // Predicated region
        $region77: #{tpu_custom_call.1} parent=63 // pred_check
          %p455 = pneg %p454
        $region78: #{tpu_custom_call.1} parent=63 // pred_check_branch
          %457 = sbr.rel (%p455) target = $region80
        $region79: #{tpu_custom_call.1} parent=63 // pred_region
          %v458 = vld [vmem:[#allocation2 + $0x15] sm:$0x7]
          %vm459 = vcmask 518144
          %460 = vst.msk [vmem:[#allocation2 + $0x5] sm:$0x7] %vm459, %v458
        $region80: #{tpu_custom_call.1} parent=63 // pred_fallthru
          _
        %v461 = vld [vmem:[%s443] sm:$0xff]
        %v462 = vld [vmem:[%s443 + $0x8] sm:$0xff]
        %v463 = vld [vmem:[%s1] sm:$0xff]
        %v464 = vld [vmem:[%s1 + $0x8] sm:$0xff]
        %v465 = vld [vmem:[%s1 + $0x10] sm:$0xff]
        %v466 = vld [vmem:[%s1 + $0x18] sm:$0xff]
        %vm467 = vcmask 261120
        %v469 = vsel %vm467, %v461, 0
        %v472 = vsel %vm467, %v462, 0
        %474 = vmatprep.subr.mxu0 0.0
        %475 = vmatpush1.msra.mxu0 0.0
        %476 = vmatprep.subr.mxu0 0.0
        %477 = vmatpush1.msra.mxu0 0.0
        %478 = vmatprep.subr.mxu0 0.0
        %479 = vmatpush1.msra.mxu0 0.0
        %480 = vmatprep.subr.mxu0 0.0
        %481 = vmatpush1.msra.mxu0 0.0
        %482 = vmatprep.subr.mxu0 0.0
        %483 = vmatpush1.msra.mxu0 0.0
        %484 = vmatprep.subr.mxu0 0.0
        %485 = vmatpush1.msra.mxu0 0.0
        %486 = vmatprep.subr.mxu0 0.0
        %487 = vmatpush1.msra.mxu0 0.0
        %488 = vmatprep.subr.mxu0 0.0
        %489 = vmatpush1.msra.mxu0 0.0
        %490 = vmatprep.subr.mxu0 0.0
        %491 = vmatpush1.msra.mxu0 0.0
        %492 = vmatprep.subr.mxu0 0.0
        %493 = vmatpush1.msra.mxu0 0.0
        %494 = vmatprep.subr.mxu0 0.0
        %495 = vmatpush1.msra.mxu0 0.0
        %496 = vmatprep.subr.mxu0 0.0
        %497 = vmatpush1.msra.mxu0 0.0
        %498 = vmatprep.subr.mxu0 0.0
        %499 = vmatpush1.msra.mxu0 %v466
        %500 = vmatprep.subr.mxu0 0.0
        %501 = vmatpush1.msra.mxu0 %v465
        %502 = vmatprep.subr.mxu0 0.0
        %503 = vmatpush1.msra.mxu0 %v464
        %504 = vmatprep.subr.mxu0 0.0
        %505 = vmatpush1.msra.mxu0 %v463
        %506 = vmatprep.subr.mxu0 0.0
        %507 = vmatpush2.msra.mxu0 0.0
        %508 = vmatprep.subr.mxu0 0.0
        %509 = vmatpush2.msra.mxu0 0.0
        %510 = vmatprep.subr.mxu0 0.0
        %511 = vmatpush2.msra.mxu0 0.0
        %512 = vmatprep.subr.mxu0 0.0
        %513 = vmatpush2.msra.mxu0 0.0
        %514 = vmatprep.subr.mxu0 0.0
        %515 = vmatpush2.msra.mxu0 0.0
        %516 = vmatprep.subr.mxu0 0.0
        %517 = vmatpush2.msra.mxu0 0.0
        %518 = vmatprep.subr.mxu0 0.0
        %519 = vmatpush2.msra.mxu0 0.0
        %520 = vmatprep.subr.mxu0 0.0
        %521 = vmatpush2.msra.mxu0 0.0
        %522 = vmatprep.subr.mxu0 0.0
        %523 = vmatpush2.msra.mxu0 0.0
        %524 = vmatprep.subr.mxu0 0.0
        %525 = vmatpush2.msra.mxu0 0.0
        %526 = vmatprep.subr.mxu0 0.0
        %527 = vmatpush2.msra.mxu0 0.0
        %528 = vmatprep.subr.mxu0 0.0
        %529 = vmatpush2.msra.mxu0 0.0
        %530 = vmatprep.subr.mxu0 0.0
        %531 = vmatpush2.msra.mxu0 0.0
        %532 = vmatprep.subr.mxu0 0.0
        %533 = vmatpush2.msra.mxu0 0.0
        %534 = vmatprep.subr.mxu0 0.0
        %535 = vmatpush2.msra.mxu0 0.0
        %536 = vmatprep.subr.mxu0 0.0
        %537 = vmatpush2.msra.mxu0 0.0
        %538 = vmatprep.mubr.f32.mxu0 0.0
        %539 = vmatmul.mubr.f32.gmra.mxu0 %v469
        %v540 = vpop.f32.mrf.mxu0
        %v541 = vadd.f32 0.0, %v540
        %v542 = vpop.f32.mrf.mxu0
        %543 = vmatprep.mubr.f32.mxu0 0.0
        %544 = vmatmul.mubr.f32.gmra.mxu0 %v472
        %v545 = vpop.f32.mrf.mxu0
        %v546 = vadd.f32 0.0, %v545
        %v547 = vpop.f32.mrf.mxu0
        %548 = vdwg.mxu0
        %vm549 = vcmask 523264
        %550 = vst.msk [vmem:[#allocation2 + $0x8] sm:$0xff] %vm549, %v541
        %551 = vst.msk [vmem:[#allocation2 + $0x10] sm:$0xff] %vm549, %v546
        %v552 = vld [vmem:[#allocation2 + $0x5] sm:$0xff]
        %v553 = vld [vmem:[#allocation2 + $0xd] sm:$0xff]
        %v554 = vld [vmem:[%s3] sm:$0x1]
        %v555 = vlaneseq
        %v556 = vshrl.u32 %v555, 7
        %v557 = vsub.s32 0, %v556
        %v558 = vrot.slane %v554, %v557
        %v559 = vmul.f32 %v552, %v558
        %v560 = vmul.f32 %v553, %v558
        %v561 = vadd.f32 %v559, 0.0
        %v562 = vadd.f32 %v560, 0.0
        %v563 = vld [vmem:[#allocation2 + $0x6] sm:$0xff]
        %v564 = vld [vmem:[#allocation2 + $0xe] sm:$0xff]
        %v565 = vld [vmem:[%s3 + $0x1] sm:$0x1]
        %v566 = vlaneseq
        %v567 = vshrl.u32 %v566, 7
        %v568 = vsub.s32 0, %v567
        %v569 = vrot.slane %v565, %v568
        %v570 = vmul.f32 %v563, %v569
        %v571 = vmul.f32 %v564, %v569
        %v572 = vadd.f32 %v561, %v570
        %v573 = vadd.f32 %v562, %v571
        %v574 = vld [vmem:[#allocation2 + $0x7] sm:$0xff]
        %v575 = vld [vmem:[#allocation2 + $0xf] sm:$0xff]
        %v576 = vld [vmem:[%s3 + $0x2] sm:$0x1]
        %v577 = vlaneseq
        %v578 = vshrl.u32 %v577, 7
        %v579 = vsub.s32 0, %v578
        %v580 = vrot.slane %v576, %v579
        %v581 = vmul.f32 %v574, %v580
        %v582 = vmul.f32 %v575, %v580
        %v583 = vadd.f32 %v572, %v581
        %v584 = vadd.f32 %v573, %v582
        %v585 = vld [vmem:[#allocation2 + $0x8] sm:$0xff]
        %v586 = vld [vmem:[#allocation2 + $0x10] sm:$0xff]
        %v587 = vld [vmem:[%s3 + $0x3] sm:$0x1]
        %v588 = vlaneseq
        %v589 = vshrl.u32 %v588, 7
        %v590 = vsub.s32 0, %v589
        %v591 = vrot.slane %v587, %v590
        %v592 = vmul.f32 %v585, %v591
        %v593 = vmul.f32 %v586, %v591
        %v594 = vadd.f32 %v583, %v592
        %v595 = vadd.f32 %v584, %v593
        %v596 = vld [vmem:[%s4] sm:$0x1]
        %v598 = vlaneseq
        %v599 = vshrl.u32 %v598, 7
        %v600 = vsub.s32 0, %v599
        %v601 = vrot.slane %v596, %v600
        %v603 = vadd.f32 %v594, %v601
        %v604 = vadd.f32 %v595, %v601
        %v605 = vxor.u32 %v603, 2147483648
        %v606 = vxor.u32 %v604, 2147483648
        %v607 = vmul.f32 %v605, 1.442695
        %v608 = vpow.pop %v607
        %v609 = vmul.f32 %v606, 1.442695
        %v610 = vpow.pop %v609
        %v611 = vadd.f32 %v608, 1.0
        %v612 = vadd.f32 %v610, 1.0
        %v613 = vrcp.pop %v611
        %v614 = vmul.f32 1.0, %v613
        %v615 = vrcp.pop %v612
        %v616 = vmul.f32 1.0, %v615
        %v617 = vmul.f32 %v603, %v614
        %v618 = vmul.f32 %v604, %v616
        %619 = vst.msk [vmem:[#allocation4] sm:$0xff] %vm549, %v617
        %620 = vst.msk [vmem:[#allocation4 + $0x8] sm:$0xff] %vm549, %v618
        %v621 = vld [vmem:[#allocation9] sm:$0xff]
        %v622 = vld [vmem:[#allocation9 + $0x8] sm:$0xff]
        %v623 = vld [vmem:[#allocation9 + $0x10] sm:$0xff]
        %v624 = vld [vmem:[#allocation9 + $0x18] sm:$0xff]
        %v625 = vld [vmem:[#allocation9 + $0x20] sm:$0xff]
        %v626 = vld [vmem:[#allocation9 + $0x28] sm:$0xff]
        %v627 = vld [vmem:[#allocation9 + $0x30] sm:$0xff]
        %v628 = vld [vmem:[#allocation9 + $0x38] sm:$0xff]
        %v629 = vld [vmem:[#allocation9 + $0x40] sm:$0xff]
        %v630 = vld [vmem:[#allocation9 + $0x48] sm:$0xff]
        %v631 = vld [vmem:[#allocation9 + $0x50] sm:$0xff]
        %v632 = vld [vmem:[#allocation9 + $0x58] sm:$0xff]
        %v633 = vld [vmem:[#allocation9 + $0x60] sm:$0xff]
        %v634 = vld [vmem:[#allocation9 + $0x68] sm:$0xff]
        %v635 = vld [vmem:[#allocation9 + $0x70] sm:$0xff]
        %v636 = vld [vmem:[#allocation9 + $0x78] sm:$0xff]
        %v637 = vld [vmem:[#allocation9 + $0x80] sm:$0xff]
        %v638 = vld [vmem:[#allocation9 + $0x88] sm:$0xff]
        %v639 = vld [vmem:[#allocation9 + $0x90] sm:$0xff]
        %v640 = vld [vmem:[#allocation9 + $0x98] sm:$0xff]
        %v641 = vld [vmem:[#allocation9 + $0xa0] sm:$0xff]
        %v642 = vld [vmem:[#allocation9 + $0xa8] sm:$0xff]
        %v643 = vld [vmem:[#allocation9 + $0xb0] sm:$0xff]
        %v644 = vld [vmem:[#allocation9 + $0xb8] sm:$0xff]
        %v646 = vsel %vm549, %v617, 0
        %v649 = vsel %vm549, %v618, 0
        %651 = vmatprep.subr.mxu0 0.0
        %652 = vmatpush1.msra.mxu0 0.0
        %653 = vmatprep.subr.mxu0 0.0
        %654 = vmatpush1.msra.mxu0 0.0
        %655 = vmatprep.subr.mxu0 0.0
        %656 = vmatpush1.msra.mxu0 0.0
        %657 = vmatprep.subr.mxu0 0.0
        %658 = vmatpush1.msra.mxu0 0.0
        %659 = vmatprep.subr.mxu0 0.0
        %660 = vmatpush1.msra.mxu0 0.0
        %661 = vmatprep.subr.mxu0 0.0
        %662 = vmatpush1.msra.mxu0 0.0
        %663 = vmatprep.subr.mxu0 0.0
        %664 = vmatpush1.msra.mxu0 0.0
        %665 = vmatprep.subr.mxu0 0.0
        %666 = vmatpush1.msra.mxu0 0.0
        %667 = vmatprep.subr.mxu0 %v643
        %668 = vmatpush1.msra.mxu0 %v642
        %669 = vmatprep.subr.mxu0 %v640
        %670 = vmatpush1.msra.mxu0 %v639
        %671 = vmatprep.subr.mxu0 %v637
        %672 = vmatpush1.msra.mxu0 %v636
        %673 = vmatprep.subr.mxu0 %v634
        %674 = vmatpush1.msra.mxu0 %v633
        %675 = vmatprep.subr.mxu0 %v631
        %676 = vmatpush1.msra.mxu0 %v630
        %677 = vmatprep.subr.mxu0 %v628
        %678 = vmatpush1.msra.mxu0 %v627
        %679 = vmatprep.subr.mxu0 %v625
        %680 = vmatpush1.msra.mxu0 %v624
        %681 = vmatprep.subr.mxu0 %v622
        %682 = vmatpush1.msra.mxu0 %v621
        %683 = vmatprep.subr.mxu0 0.0
        %684 = vmatpush2.msra.mxu0 0.0
        %685 = vmatprep.subr.mxu0 0.0
        %686 = vmatpush2.msra.mxu0 0.0
        %687 = vmatprep.subr.mxu0 0.0
        %688 = vmatpush2.msra.mxu0 0.0
        %689 = vmatprep.subr.mxu0 0.0
        %690 = vmatpush2.msra.mxu0 0.0
        %691 = vmatprep.subr.mxu0 0.0
        %692 = vmatpush2.msra.mxu0 0.0
        %693 = vmatprep.subr.mxu0 0.0
        %694 = vmatpush2.msra.mxu0 0.0
        %695 = vmatprep.subr.mxu0 0.0
        %696 = vmatpush2.msra.mxu0 0.0
        %697 = vmatprep.subr.mxu0 0.0
        %698 = vmatpush2.msra.mxu0 0.0
        %699 = vmatprep.subr.mxu0 0.0
        %700 = vmatpush2.msra.mxu0 0.0
        %701 = vmatprep.subr.mxu0 0.0
        %702 = vmatpush2.msra.mxu0 0.0
        %703 = vmatprep.subr.mxu0 0.0
        %704 = vmatpush2.msra.mxu0 0.0
        %705 = vmatprep.subr.mxu0 0.0
        %706 = vmatpush2.msra.mxu0 0.0
        %707 = vmatprep.subr.mxu0 0.0
        %708 = vmatpush2.msra.mxu0 0.0
        %709 = vmatprep.subr.mxu0 0.0
        %710 = vmatpush2.msra.mxu0 0.0
        %711 = vmatprep.subr.mxu0 0.0
        %712 = vmatpush2.msra.mxu0 0.0
        %713 = vmatprep.subr.mxu0 0.0
        %714 = vmatpush2.msra.mxu0 0.0
        %715 = vmatprep.mubr.f32.mxu0 0.0
        %716 = vmatmul.mubr.f32.gmra.mxu0 %v646
        %v717 = vpop.f32.mrf.mxu0
        %v718 = vadd.f32 0.0, %v717
        %v719 = vpop.f32.mrf.mxu0
        %v720 = vadd.f32 0.0, %v719
        %721 = vmatprep.mubr.f32.mxu0 0.0
        %722 = vmatmul.mubr.f32.gmra.mxu0 %v649
        %v723 = vpop.f32.mrf.mxu0
        %v724 = vadd.f32 0.0, %v723
        %v725 = vpop.f32.mrf.mxu0
        %v726 = vadd.f32 0.0, %v725
        %727 = vdwg.mxu0
        %728 = vmatprep.subr.mxu0 0.0
        %729 = vmatpush1.msra.mxu0 0.0
        %730 = vmatprep.subr.mxu0 0.0
        %731 = vmatpush1.msra.mxu0 0.0
        %732 = vmatprep.subr.mxu0 0.0
        %733 = vmatpush1.msra.mxu0 0.0
        %734 = vmatprep.subr.mxu0 0.0
        %735 = vmatpush1.msra.mxu0 0.0
        %736 = vmatprep.subr.mxu0 0.0
        %737 = vmatpush1.msra.mxu0 0.0
        %738 = vmatprep.subr.mxu0 0.0
        %739 = vmatpush1.msra.mxu0 0.0
        %740 = vmatprep.subr.mxu0 0.0
        %741 = vmatpush1.msra.mxu0 0.0
        %742 = vmatprep.subr.mxu0 0.0
        %743 = vmatpush1.msra.mxu0 0.0
        %744 = vmatprep.subr.mxu0 0.0
        %745 = vmatpush1.msra.mxu0 %v644
        %746 = vmatprep.subr.mxu0 0.0
        %747 = vmatpush1.msra.mxu0 %v641
        %748 = vmatprep.subr.mxu0 0.0
        %749 = vmatpush1.msra.mxu0 %v638
        %750 = vmatprep.subr.mxu0 0.0
        %751 = vmatpush1.msra.mxu0 %v635
        %752 = vmatprep.subr.mxu0 0.0
        %753 = vmatpush1.msra.mxu0 %v632
        %754 = vmatprep.subr.mxu0 0.0
        %755 = vmatpush1.msra.mxu0 %v629
        %756 = vmatprep.subr.mxu0 0.0
        %757 = vmatpush1.msra.mxu0 %v626
        %758 = vmatprep.subr.mxu0 0.0
        %759 = vmatpush1.msra.mxu0 %v623
        %760 = vmatprep.subr.mxu0 0.0
        %761 = vmatpush2.msra.mxu0 0.0
        %762 = vmatprep.subr.mxu0 0.0
        %763 = vmatpush2.msra.mxu0 0.0
        %764 = vmatprep.subr.mxu0 0.0
        %765 = vmatpush2.msra.mxu0 0.0
        %766 = vmatprep.subr.mxu0 0.0
        %767 = vmatpush2.msra.mxu0 0.0
        %768 = vmatprep.subr.mxu0 0.0
        %769 = vmatpush2.msra.mxu0 0.0
        %770 = vmatprep.subr.mxu0 0.0
        %771 = vmatpush2.msra.mxu0 0.0
        %772 = vmatprep.subr.mxu0 0.0
        %773 = vmatpush2.msra.mxu0 0.0
        %774 = vmatprep.subr.mxu0 0.0
        %775 = vmatpush2.msra.mxu0 0.0
        %776 = vmatprep.subr.mxu0 0.0
        %777 = vmatpush2.msra.mxu0 0.0
        %778 = vmatprep.subr.mxu0 0.0
        %779 = vmatpush2.msra.mxu0 0.0
        %780 = vmatprep.subr.mxu0 0.0
        %781 = vmatpush2.msra.mxu0 0.0
        %782 = vmatprep.subr.mxu0 0.0
        %783 = vmatpush2.msra.mxu0 0.0
        %784 = vmatprep.subr.mxu0 0.0
        %785 = vmatpush2.msra.mxu0 0.0
        %786 = vmatprep.subr.mxu0 0.0
        %787 = vmatpush2.msra.mxu0 0.0
        %788 = vmatprep.subr.mxu0 0.0
        %789 = vmatpush2.msra.mxu0 0.0
        %790 = vmatprep.subr.mxu0 0.0
        %791 = vmatpush2.msra.mxu0 0.0
        %792 = vmatprep.mubr.f32.mxu0 0.0
        %793 = vmatmul.mubr.f32.gmra.mxu0 %v646
        %v794 = vpop.f32.mrf.mxu0
        %v795 = vadd.f32 0.0, %v794
        %v796 = vpop.f32.mrf.mxu0
        %797 = vmatprep.mubr.f32.mxu0 0.0
        %798 = vmatmul.mubr.f32.gmra.mxu0 %v649
        %v799 = vpop.f32.mrf.mxu0
        %v800 = vadd.f32 0.0, %v799
        %v801 = vpop.f32.mrf.mxu0
        %802 = vdwg.mxu0
        %vm803 = vcmask 130048
        %804 = vst.msk [vmem:[#allocation5] sm:$0xff] %vm803, %v720
        %805 = vst.msk [vmem:[#allocation5 + $0x8] sm:$0xff] %vm803, %v726
        %806 = vst.msk [vmem:[#allocation6] sm:$0xff] %vm803, %v795
        %807 = vst.msk [vmem:[#allocation6 + $0x8] sm:$0xff] %vm803, %v800
        %v808 = vld [vmem:[%s6] sm:$0x3]
        %v809 = vld [vmem:[%s7] sm:$0x1]
        %v811 = vlaneseq
        %v812 = vshrl.u32 %v811, 7
        %v813 = vsub.s32 0, %v812
        %v814 = vrot.slane %v809, %v813
        %vm816 = vcmask 15360
        %v818 = vsel %vm816, %v718, 0
        %v821 = vsel %vm816, %v724, 0
        %vm823 = vcmask 1041408
        %v825 = vsel %vm823, %v808, 0
        %827 = vmatprep.subr.mxu0 0.0
        %828 = vmatpush1.msra.mxu0 0.0
        %829 = vmatprep.subr.mxu0 0.0
        %830 = vmatpush1.msra.mxu0 0.0
        %831 = vmatprep.subr.mxu0 0.0
        %832 = vmatpush1.msra.mxu0 0.0
        %833 = vmatprep.subr.mxu0 0.0
        %834 = vmatpush1.msra.mxu0 0.0
        %835 = vmatprep.subr.mxu0 0.0
        %836 = vmatpush1.msra.mxu0 0.0
        %837 = vmatprep.subr.mxu0 0.0
        %838 = vmatpush1.msra.mxu0 0.0
        %839 = vmatprep.subr.mxu0 0.0
        %840 = vmatpush1.msra.mxu0 0.0
        %841 = vmatprep.subr.mxu0 0.0
        %842 = vmatpush1.msra.mxu0 0.0
        %843 = vmatprep.subr.mxu0 0.0
        %844 = vmatpush1.msra.mxu0 0.0
        %845 = vmatprep.subr.mxu0 0.0
        %846 = vmatpush1.msra.mxu0 0.0
        %847 = vmatprep.subr.mxu0 0.0
        %848 = vmatpush1.msra.mxu0 0.0
        %849 = vmatprep.subr.mxu0 0.0
        %850 = vmatpush1.msra.mxu0 0.0
        %851 = vmatprep.subr.mxu0 0.0
        %852 = vmatpush1.msra.mxu0 0.0
        %853 = vmatprep.subr.mxu0 0.0
        %854 = vmatpush1.msra.mxu0 0.0
        %855 = vmatprep.subr.mxu0 0.0
        %856 = vmatpush1.msra.mxu0 0.0
        %857 = vmatprep.subr.mxu0 0.0
        %858 = vmatpush1.msra.mxu0 %v825
        %859 = vmatprep.subr.mxu0 0.0
        %860 = vmatpush2.msra.mxu0 0.0
        %861 = vmatprep.subr.mxu0 0.0
        %862 = vmatpush2.msra.mxu0 0.0
        %863 = vmatprep.subr.mxu0 0.0
        %864 = vmatpush2.msra.mxu0 0.0
        %865 = vmatprep.subr.mxu0 0.0
        %866 = vmatpush2.msra.mxu0 0.0
        %867 = vmatprep.subr.mxu0 0.0
        %868 = vmatpush2.msra.mxu0 0.0
        %869 = vmatprep.subr.mxu0 0.0
        %870 = vmatpush2.msra.mxu0 0.0
        %871 = vmatprep.subr.mxu0 0.0
        %872 = vmatpush2.msra.mxu0 0.0
        %873 = vmatprep.subr.mxu0 0.0
        %874 = vmatpush2.msra.mxu0 0.0
        %875 = vmatprep.subr.mxu0 0.0
        %876 = vmatpush2.msra.mxu0 0.0
        %877 = vmatprep.subr.mxu0 0.0
        %878 = vmatpush2.msra.mxu0 0.0
        %879 = vmatprep.subr.mxu0 0.0
        %880 = vmatpush2.msra.mxu0 0.0
        %881 = vmatprep.subr.mxu0 0.0
        %882 = vmatpush2.msra.mxu0 0.0
        %883 = vmatprep.subr.mxu0 0.0
        %884 = vmatpush2.msra.mxu0 0.0
        %885 = vmatprep.subr.mxu0 0.0
        %886 = vmatpush2.msra.mxu0 0.0
        %887 = vmatprep.subr.mxu0 0.0
        %888 = vmatpush2.msra.mxu0 0.0
        %889 = vmatprep.subr.mxu0 0.0
        %890 = vmatpush2.msra.mxu0 0.0
        %891 = vmatprep.mubr.f32.mxu0 0.0
        %892 = vmatmul.mubr.f32.gmra.mxu0 %v818
        %v893 = vpop.f32.mrf.mxu0
        %v894 = vadd.f32 %v814, %v893
        %v895 = vpop.f32.mrf.mxu0
        %896 = vmatprep.mubr.f32.mxu0 0.0
        %897 = vmatmul.mubr.f32.gmra.mxu0 %v821
        %v898 = vpop.f32.mrf.mxu0
        %v899 = vadd.f32 %v814, %v898
        %v900 = vpop.f32.mrf.mxu0
        %901 = vdwg.mxu0
        %v902 = vmax.f32 %v894, 0.0
        %v903 = vmax.f32 %v899, 0.0
        %v904 = vand.u32 2147483647, %v894
        %v905 = vand.u32 2147483647, %v899
        %v906 = vsub.f32 0.0, %v904
        %v907 = vsub.f32 0.0, %v905
        %v908 = vmul.f32 %v906, 1.442695
        %v909 = vpow.pop %v908
        %v910 = vmul.f32 %v907, 1.442695
        %v911 = vpow.pop %v910
        %v912 = vadd.f32 %v909, 1.0
        %v913 = vlog2.pop %v912
        %v914 = vmul.f32 %v913, 0.6931472
        %v915 = vmul.f32 -0.5, %v909
        %v916 = vadd.f32 %v915, 1.0
        %v917 = vmul.f32 %v916, %v909
        %v918 = vand.u32 2147483647, %v909
        %vm919 = vcmp.lt.f32.partialorder %v918, 0.0004427343
        %v920 = vsel %vm919, %v917, %v914
        %v921 = vadd.f32 %v911, 1.0
        %v922 = vlog2.pop %v921
        %v923 = vmul.f32 %v922, 0.6931472
        %v924 = vmul.f32 -0.5, %v911
        %v925 = vadd.f32 %v924, 1.0
        %v926 = vmul.f32 %v925, %v911
        %v927 = vand.u32 2147483647, %v911
        %vm928 = vcmp.lt.f32.partialorder %v927, 0.0004427343
        %v929 = vsel %vm928, %v926, %v923
        %v930 = vadd.f32 %v902, %v920
        %v931 = vadd.f32 %v903, %v929
        %932 = vst.msk [vmem:[#allocation3] sm:$0xff] %vm549, %v930
        %933 = vst.msk [vmem:[#allocation3 + $0x8] sm:$0xff] %vm549, %v931
        %v934 = vld [vmem:[#allocation12] sm:$0xff]
        %v935 = vld [vmem:[#allocation12 + $0x8] sm:$0xff]
        %v936 = vld [vmem:[#allocation8] sm:$0xff]
        %v937 = vld [vmem:[#allocation8 + $0x8] sm:$0xff]
        %v938 = vld [vmem:[#allocation3] sm:$0xff]
        %v939 = vld [vmem:[#allocation3 + $0x8] sm:$0xff]
        %v940 = vld [vmem:[#allocation4] sm:$0xff]
        %v941 = vld [vmem:[#allocation4 + $0x8] sm:$0xff]
        %v942 = vmul.f32 %v938, %v940
        %v943 = vmul.f32 %v939, %v941
        %v944 = vld [vmem:[#allocation5] sm:$0xff]
        %v945 = vld [vmem:[#allocation5 + $0x8] sm:$0xff]
        %v946 = vld [vmem:[#allocation6] sm:$0xff]
        %v947 = vld [vmem:[#allocation6 + $0x8] sm:$0xff]
        %948 = vxpose.xlu0.b32.start [1/16] %v946, 128
        %949 = vxpose.xlu0.b32.cont [2/16] %v947, 128
        %950 = vxpose.xlu0.b32.cont [3/16] 0.0, 128
        %951 = vxpose.xlu0.b32.cont [4/16] 0.0, 128
        %952 = vxpose.xlu0.b32.cont [5/16] 0.0, 128
        %953 = vxpose.xlu0.b32.cont [6/16] 0.0, 128
        %954 = vxpose.xlu0.b32.cont [7/16] 0.0, 128
        %955 = vxpose.xlu0.b32.cont [8/16] 0.0, 128
        %956 = vxpose.xlu0.b32.cont [9/16] 0.0, 128
        %957 = vxpose.xlu0.b32.cont [10/16] 0.0, 128
        %958 = vxpose.xlu0.b32.cont [11/16] 0.0, 128
        %959 = vxpose.xlu0.b32.cont [12/16] 0.0, 128
        %960 = vxpose.xlu0.b32.cont [13/16] 0.0, 128
        %961 = vxpose.xlu0.b32.cont [14/16] 0.0, 128
        %962 = vxpose.xlu0.b32.cont [15/16] 0.0, 128
        %963 = vxpose.xlu0.b32.end [16/16] 0.0, 128
        %v964 = vpop.trf.xlu0
        %v965 = vpop.trf.xlu0
        %v966 = vpop.trf.xlu0
        %v967 = vpop.trf.xlu0
        %v968 = vpop.trf.xlu0
        %v969 = vpop.trf.xlu0
        %v970 = vpop.trf.xlu0
        %v971 = vpop.trf.xlu0
        %v972 = vpop.trf.xlu0
        %v973 = vpop.trf.xlu0
        %v974 = vpop.trf.xlu0
        %v975 = vpop.trf.xlu0
        %v976 = vpop.trf.xlu0
        %v977 = vpop.trf.xlu0
        %v978 = vpop.trf.xlu0
        %v979 = vpop.trf.xlu0
        %v982 = vcombine.high %v938, %v938
        %v984 = vunpack.c.l.s4 1966171168
        %v985 = vunpack.c.0.s8 %v984
        %v986 = vlaneseq
        %v987 = vshrl.u32 %v986, 7
        %v988 = vsub.s32 %v985, %v987
        %v989 = vrot.slane %v938, %v988
        %v991 = vunpack.c.l.s4 1966171168
        %v992 = vunpack.c.0.s8 %v991
        %v993 = vlaneseq
        %v994 = vshrl.u32 %v993, 7
        %v995 = vsub.s32 %v992, %v994
        %v996 = vrot.slane %v982, %v995
        %v997 = vcombine.high %v989, %v989
        %v998 = vcombine.high %v996, %v996
        %v1000 = vunpack.c.l.s4 1966171168
        %v1001 = vunpack.c.0.s8 %v1000
        %v1002 = vlaneseq
        %v1003 = vshrl.u32 %v1002, 7
        %v1004 = vsub.s32 %v1001, %v1003
        %v1005 = vrot.slane %v989, %v1004
        %v1007 = vunpack.c.l.s4 1966171168
        %v1008 = vunpack.c.0.s8 %v1007
        %v1009 = vlaneseq
        %v1010 = vshrl.u32 %v1009, 7
        %v1011 = vsub.s32 %v1008, %v1010
        %v1012 = vrot.slane %v996, %v1011
        %v1014 = vunpack.c.l.s4 1966171168
        %v1015 = vunpack.c.0.s8 %v1014
        %v1016 = vlaneseq
        %v1017 = vshrl.u32 %v1016, 7
        %v1018 = vsub.s32 %v1015, %v1017
        %v1019 = vrot.slane %v997, %v1018
        %v1021 = vunpack.c.l.s4 1966171168
        %v1022 = vunpack.c.0.s8 %v1021
        %v1023 = vlaneseq
        %v1024 = vshrl.u32 %v1023, 7
        %v1025 = vsub.s32 %v1022, %v1024
        %v1026 = vrot.slane %v998, %v1025
        %v1027 = vcombine.high %v1005, %v1005
        %v1028 = vcombine.high %v1012, %v1012
        %v1029 = vcombine.high %v1019, %v1019
        %v1030 = vcombine.high %v1026, %v1026
        %v1031 = vcombine.high %v939, %v939
        %v1033 = vunpack.c.l.s4 1966171168
        %v1034 = vunpack.c.0.s8 %v1033
        %v1035 = vlaneseq
        %v1036 = vshrl.u32 %v1035, 7
        %v1037 = vsub.s32 %v1034, %v1036
        %v1038 = vrot.slane %v939, %v1037
        %v1040 = vunpack.c.l.s4 1966171168
        %v1041 = vunpack.c.0.s8 %v1040
        %v1042 = vlaneseq
        %v1043 = vshrl.u32 %v1042, 7
        %v1044 = vsub.s32 %v1041, %v1043
        %v1045 = vrot.slane %v1031, %v1044
        %v1046 = vcombine.high %v1038, %v1038
        %v1047 = vcombine.high %v1045, %v1045
        %v1049 = vunpack.c.l.s4 1966171168
        %v1050 = vunpack.c.0.s8 %v1049
        %v1051 = vlaneseq
        %v1052 = vshrl.u32 %v1051, 7
        %v1053 = vsub.s32 %v1050, %v1052
        %v1054 = vrot.slane %v1038, %v1053
        %v1056 = vunpack.c.l.s4 1966171168
        %v1057 = vunpack.c.0.s8 %v1056
        %v1058 = vlaneseq
        %v1059 = vshrl.u32 %v1058, 7
        %v1060 = vsub.s32 %v1057, %v1059
        %v1061 = vrot.slane %v1045, %v1060
        %v1063 = vunpack.c.l.s4 1966171168
        %v1064 = vunpack.c.0.s8 %v1063
        %v1065 = vlaneseq
        %v1066 = vshrl.u32 %v1065, 7
        %v1067 = vsub.s32 %v1064, %v1066
        %v1068 = vrot.slane %v1046, %v1067
        %v1070 = vunpack.c.l.s4 1966171168
        %v1071 = vunpack.c.0.s8 %v1070
        %v1072 = vlaneseq
        %v1073 = vshrl.u32 %v1072, 7
        %v1074 = vsub.s32 %v1071, %v1073
        %v1075 = vrot.slane %v1047, %v1074
        %v1076 = vcombine.high %v1054, %v1054
        %v1077 = vcombine.high %v1061, %v1061
        %v1078 = vcombine.high %v1068, %v1068
        %v1079 = vcombine.high %v1075, %v1075
        %v1080 = vlaneseq
        %v1081 = vshrl.u32 %v1080, 7
        %v1082 = vsub.s32 0, %v1081
        %v1083 = vrot.slane %v1005, %v1082
        %v1084 = vlaneseq
        %v1085 = vshrl.u32 %v1084, 7
        %v1086 = vsub.s32 0, %v1085
        %v1087 = vrot.slane %v1019, %v1086
        %v1088 = vlaneseq
        %v1089 = vshrl.u32 %v1088, 7
        %v1090 = vsub.s32 0, %v1089
        %v1091 = vrot.slane %v1027, %v1090
        %v1092 = vlaneseq
        %v1093 = vshrl.u32 %v1092, 7
        %v1094 = vsub.s32 0, %v1093
        %v1095 = vrot.slane %v1029, %v1094
        %v1096 = vlaneseq
        %v1097 = vshrl.u32 %v1096, 7
        %v1098 = vsub.s32 0, %v1097
        %v1099 = vrot.slane %v1012, %v1098
        %v1100 = vlaneseq
        %v1101 = vshrl.u32 %v1100, 7
        %v1102 = vsub.s32 0, %v1101
        %v1103 = vrot.slane %v1026, %v1102
        %v1104 = vlaneseq
        %v1105 = vshrl.u32 %v1104, 7
        %v1106 = vsub.s32 0, %v1105
        %v1107 = vrot.slane %v1028, %v1106
        %v1108 = vlaneseq
        %v1109 = vshrl.u32 %v1108, 7
        %v1110 = vsub.s32 0, %v1109
        %v1111 = vrot.slane %v1030, %v1110
        %v1112 = vlaneseq
        %v1113 = vshrl.u32 %v1112, 7
        %v1114 = vsub.s32 0, %v1113
        %v1115 = vrot.slane %v1054, %v1114
        %v1116 = vlaneseq
        %v1117 = vshrl.u32 %v1116, 7
        %v1118 = vsub.s32 0, %v1117
        %v1119 = vrot.slane %v1068, %v1118
        %v1120 = vlaneseq
        %v1121 = vshrl.u32 %v1120, 7
        %v1122 = vsub.s32 0, %v1121
        %v1123 = vrot.slane %v1076, %v1122
        %v1124 = vlaneseq
        %v1125 = vshrl.u32 %v1124, 7
        %v1126 = vsub.s32 0, %v1125
        %v1127 = vrot.slane %v1078, %v1126
        %v1128 = vlaneseq
        %v1129 = vshrl.u32 %v1128, 7
        %v1130 = vsub.s32 0, %v1129
        %v1131 = vrot.slane %v1061, %v1130
        %v1132 = vlaneseq
        %v1133 = vshrl.u32 %v1132, 7
        %v1134 = vsub.s32 0, %v1133
        %v1135 = vrot.slane %v1075, %v1134
        %v1136 = vlaneseq
        %v1137 = vshrl.u32 %v1136, 7
        %v1138 = vsub.s32 0, %v1137
        %v1139 = vrot.slane %v1077, %v1138
        %v1140 = vlaneseq
        %v1141 = vshrl.u32 %v1140, 7
        %v1142 = vsub.s32 0, %v1141
        %v1143 = vrot.slane %v1079, %v1142
        %v1160 = vmul.f32 %v1083, %v934
        %v1161 = vmul.f32 %v1083, %v935
        %v1162 = vmul.f32 %v1087, %v934
        %v1163 = vmul.f32 %v1087, %v935
        %v1164 = vmul.f32 %v1091, %v934
        %v1165 = vmul.f32 %v1091, %v935
        %v1166 = vmul.f32 %v1095, %v934
        %v1167 = vmul.f32 %v1095, %v935
        %v1168 = vmul.f32 %v1099, %v934
        %v1169 = vmul.f32 %v1099, %v935
        %v1170 = vmul.f32 %v1103, %v934
        %v1171 = vmul.f32 %v1103, %v935
        %v1172 = vmul.f32 %v1107, %v934
        %v1173 = vmul.f32 %v1107, %v935
        %v1174 = vmul.f32 %v1111, %v934
        %v1175 = vmul.f32 %v1111, %v935
        %v1176 = vmul.f32 %v1115, %v934
        %v1177 = vmul.f32 %v1115, %v935
        %v1178 = vmul.f32 %v1119, %v934
        %v1179 = vmul.f32 %v1119, %v935
        %v1180 = vmul.f32 %v1123, %v934
        %v1181 = vmul.f32 %v1123, %v935
        %v1182 = vmul.f32 %v1127, %v934
        %v1183 = vmul.f32 %v1127, %v935
        %v1184 = vmul.f32 %v1131, %v934
        %v1185 = vmul.f32 %v1131, %v935
        %v1186 = vmul.f32 %v1135, %v934
        %v1187 = vmul.f32 %v1135, %v935
        %v1188 = vmul.f32 %v1139, %v934
        %v1189 = vmul.f32 %v1139, %v935
        %v1190 = vmul.f32 %v1143, %v934
        %v1191 = vmul.f32 %v1143, %v935
        %v1192 = vmul.f32 %v1160, 1.442695
        %v1193 = vpow.pop %v1192
        %v1194 = vmul.f32 %v1161, 1.442695
        %v1195 = vpow.pop %v1194
        %v1196 = vmul.f32 %v1162, 1.442695
        %v1197 = vpow.pop %v1196
        %v1198 = vmul.f32 %v1163, 1.442695
        %v1199 = vpow.pop %v1198
        %v1200 = vmul.f32 %v1164, 1.442695
        %v1201 = vpow.pop %v1200
        %v1202 = vmul.f32 %v1165, 1.442695
        %v1203 = vpow.pop %v1202
        %v1204 = vmul.f32 %v1166, 1.442695
        %v1205 = vpow.pop %v1204
        %v1206 = vmul.f32 %v1167, 1.442695
        %v1207 = vpow.pop %v1206
        %v1208 = vmul.f32 %v1168, 1.442695
        %v1209 = vpow.pop %v1208
        %v1210 = vmul.f32 %v1169, 1.442695
        %v1211 = vpow.pop %v1210
        %v1212 = vmul.f32 %v1170, 1.442695
        %v1213 = vpow.pop %v1212
        %v1214 = vmul.f32 %v1171, 1.442695
        %v1215 = vpow.pop %v1214
        %v1216 = vmul.f32 %v1172, 1.442695
        %v1217 = vpow.pop %v1216
        %v1218 = vmul.f32 %v1173, 1.442695
        %v1219 = vpow.pop %v1218
        %v1220 = vmul.f32 %v1174, 1.442695
        %v1221 = vpow.pop %v1220
        %v1222 = vmul.f32 %v1175, 1.442695
        %v1223 = vpow.pop %v1222
        %v1224 = vmul.f32 %v1176, 1.442695
        %v1225 = vpow.pop %v1224
        %v1226 = vmul.f32 %v1177, 1.442695
        %v1227 = vpow.pop %v1226
        %v1228 = vmul.f32 %v1178, 1.442695
        %v1229 = vpow.pop %v1228
        %v1230 = vmul.f32 %v1179, 1.442695
        %v1231 = vpow.pop %v1230
        %v1232 = vmul.f32 %v1180, 1.442695
        %v1233 = vpow.pop %v1232
        %v1234 = vmul.f32 %v1181, 1.442695
        %v1235 = vpow.pop %v1234
        %v1236 = vmul.f32 %v1182, 1.442695
        %v1237 = vpow.pop %v1236
        %v1238 = vmul.f32 %v1183, 1.442695
        %v1239 = vpow.pop %v1238
        %v1240 = vmul.f32 %v1184, 1.442695
        %v1241 = vpow.pop %v1240
        %v1242 = vmul.f32 %v1185, 1.442695
        %v1243 = vpow.pop %v1242
        %v1244 = vmul.f32 %v1186, 1.442695
        %v1245 = vpow.pop %v1244
        %v1246 = vmul.f32 %v1187, 1.442695
        %v1247 = vpow.pop %v1246
        %v1248 = vmul.f32 %v1188, 1.442695
        %v1249 = vpow.pop %v1248
        %v1250 = vmul.f32 %v1189, 1.442695
        %v1251 = vpow.pop %v1250
        %v1252 = vmul.f32 %v1190, 1.442695
        %v1253 = vpow.pop %v1252
        %v1254 = vmul.f32 %v1191, 1.442695
        %v1255 = vpow.pop %v1254
        %v1256 = vlaneseq
        %v1257 = vshrl.u32 %v1256, 7
        %v1258 = vsub.s32 0, %v1257
        %v1259 = vrot.slane %v944, %v1258
        %1261 = vbcast.lane.b32.xlu0 %v1259, 256
        %v1262 = vpop.permute.xlu0 %1261
        %s1264 = sor.u32 256, 8
        %1265 = vbcast.lane.b32.xlu0 %v1259, %s1264
        %v1266 = vpop.permute.xlu0 %1265
        %v1267 = vlaneseq
        %v1268 = vshrl.u32 %v1267, 7
        %v1269 = vsub.s32 1, %v1268
        %v1270 = vrot.slane %v944, %v1269
        %1272 = vbcast.lane.b32.xlu0 %v1270, 256
        %v1273 = vpop.permute.xlu0 %1272
        %s1275 = sor.u32 256, 8
        %1276 = vbcast.lane.b32.xlu0 %v1270, %s1275
        %v1277 = vpop.permute.xlu0 %1276
        %v1278 = vlaneseq
        %v1279 = vshrl.u32 %v1278, 7
        %v1280 = vsub.s32 2, %v1279
        %v1281 = vrot.slane %v944, %v1280
        %1283 = vbcast.lane.b32.xlu0 %v1281, 256
        %v1284 = vpop.permute.xlu0 %1283
        %s1286 = sor.u32 256, 8
        %1287 = vbcast.lane.b32.xlu0 %v1281, %s1286
        %v1288 = vpop.permute.xlu0 %1287
        %v1289 = vlaneseq
        %v1290 = vshrl.u32 %v1289, 7
        %v1291 = vsub.s32 3, %v1290
        %v1292 = vrot.slane %v944, %v1291
        %1294 = vbcast.lane.b32.xlu0 %v1292, 256
        %v1295 = vpop.permute.xlu0 %1294
        %s1297 = sor.u32 256, 8
        %1298 = vbcast.lane.b32.xlu0 %v1292, %s1297
        %v1299 = vpop.permute.xlu0 %1298
        %v1300 = vlaneseq
        %v1301 = vshrl.u32 %v1300, 7
        %v1302 = vsub.s32 4, %v1301
        %v1303 = vrot.slane %v944, %v1302
        %1305 = vbcast.lane.b32.xlu0 %v1303, 256
        %v1306 = vpop.permute.xlu0 %1305
        %s1308 = sor.u32 256, 8
        %1309 = vbcast.lane.b32.xlu0 %v1303, %s1308
        %v1310 = vpop.permute.xlu0 %1309
        %v1311 = vlaneseq
        %v1312 = vshrl.u32 %v1311, 7
        %v1313 = vsub.s32 5, %v1312
        %v1314 = vrot.slane %v944, %v1313
        %1316 = vbcast.lane.b32.xlu0 %v1314, 256
        %v1317 = vpop.permute.xlu0 %1316
        %s1319 = sor.u32 256, 8
        %1320 = vbcast.lane.b32.xlu0 %v1314, %s1319
        %v1321 = vpop.permute.xlu0 %1320
        %v1322 = vlaneseq
        %v1323 = vshrl.u32 %v1322, 7
        %v1324 = vsub.s32 6, %v1323
        %v1325 = vrot.slane %v944, %v1324
        %1327 = vbcast.lane.b32.xlu0 %v1325, 256
        %v1328 = vpop.permute.xlu0 %1327
        %s1330 = sor.u32 256, 8
        %1331 = vbcast.lane.b32.xlu0 %v1325, %s1330
        %v1332 = vpop.permute.xlu0 %1331
        %v1333 = vlaneseq
        %v1334 = vshrl.u32 %v1333, 7
        %v1335 = vsub.s32 7, %v1334
        %v1336 = vrot.slane %v944, %v1335
        %1338 = vbcast.lane.b32.xlu0 %v1336, 256
        %v1339 = vpop.permute.xlu0 %1338
        %s1341 = sor.u32 256, 8
        %1342 = vbcast.lane.b32.xlu0 %v1336, %s1341
        %v1343 = vpop.permute.xlu0 %1342
        %v1344 = vlaneseq
        %v1345 = vshrl.u32 %v1344, 7
        %v1346 = vsub.s32 0, %v1345
        %v1347 = vrot.slane %v945, %v1346
        %1349 = vbcast.lane.b32.xlu0 %v1347, 256
        %v1350 = vpop.permute.xlu0 %1349
        %s1352 = sor.u32 256, 8
        %1353 = vbcast.lane.b32.xlu0 %v1347, %s1352
        %v1354 = vpop.permute.xlu0 %1353
        %v1355 = vlaneseq
        %v1356 = vshrl.u32 %v1355, 7
        %v1357 = vsub.s32 1, %v1356
        %v1358 = vrot.slane %v945, %v1357
        %1360 = vbcast.lane.b32.xlu0 %v1358, 256
        %v1361 = vpop.permute.xlu0 %1360
        %s1363 = sor.u32 256, 8
        %1364 = vbcast.lane.b32.xlu0 %v1358, %s1363
        %v1365 = vpop.permute.xlu0 %1364
        %v1366 = vlaneseq
        %v1367 = vshrl.u32 %v1366, 7
        %v1368 = vsub.s32 2, %v1367
        %v1369 = vrot.slane %v945, %v1368
        %1371 = vbcast.lane.b32.xlu0 %v1369, 256
        %v1372 = vpop.permute.xlu0 %1371
        %s1374 = sor.u32 256, 8
        %1375 = vbcast.lane.b32.xlu0 %v1369, %s1374
        %v1376 = vpop.permute.xlu0 %1375
        %v1377 = vlaneseq
        %v1378 = vshrl.u32 %v1377, 7
        %v1379 = vsub.s32 3, %v1378
        %v1380 = vrot.slane %v945, %v1379
        %1382 = vbcast.lane.b32.xlu0 %v1380, 256
        %v1383 = vpop.permute.xlu0 %1382
        %s1385 = sor.u32 256, 8
        %1386 = vbcast.lane.b32.xlu0 %v1380, %s1385
        %v1387 = vpop.permute.xlu0 %1386
        %v1388 = vlaneseq
        %v1389 = vshrl.u32 %v1388, 7
        %v1390 = vsub.s32 4, %v1389
        %v1391 = vrot.slane %v945, %v1390
        %1393 = vbcast.lane.b32.xlu0 %v1391, 256
        %v1394 = vpop.permute.xlu0 %1393
        %s1396 = sor.u32 256, 8
        %1397 = vbcast.lane.b32.xlu0 %v1391, %s1396
        %v1398 = vpop.permute.xlu0 %1397
        %v1399 = vlaneseq
        %v1400 = vshrl.u32 %v1399, 7
        %v1401 = vsub.s32 5, %v1400
        %v1402 = vrot.slane %v945, %v1401
        %1404 = vbcast.lane.b32.xlu0 %v1402, 256
        %v1405 = vpop.permute.xlu0 %1404
        %s1407 = sor.u32 256, 8
        %1408 = vbcast.lane.b32.xlu0 %v1402, %s1407
        %v1409 = vpop.permute.xlu0 %1408
        %v1410 = vlaneseq
        %v1411 = vshrl.u32 %v1410, 7
        %v1412 = vsub.s32 6, %v1411
        %v1413 = vrot.slane %v945, %v1412
        %1415 = vbcast.lane.b32.xlu0 %v1413, 256
        %v1416 = vpop.permute.xlu0 %1415
        %s1418 = sor.u32 256, 8
        %1419 = vbcast.lane.b32.xlu0 %v1413, %s1418
        %v1420 = vpop.permute.xlu0 %1419
        %v1421 = vlaneseq
        %v1422 = vshrl.u32 %v1421, 7
        %v1423 = vsub.s32 7, %v1422
        %v1424 = vrot.slane %v945, %v1423
        %1426 = vbcast.lane.b32.xlu0 %v1424, 256
        %v1427 = vpop.permute.xlu0 %1426
        %s1429 = sor.u32 256, 8
        %1430 = vbcast.lane.b32.xlu0 %v1424, %s1429
        %v1431 = vpop.permute.xlu0 %1430
        %v1434 = vcombine.high %v942, %v942
        %v1436 = vunpack.c.l.s4 1966171168
        %v1437 = vunpack.c.0.s8 %v1436
        %v1438 = vlaneseq
        %v1439 = vshrl.u32 %v1438, 7
        %v1440 = vsub.s32 %v1437, %v1439
        %v1441 = vrot.slane %v942, %v1440
        %v1443 = vunpack.c.l.s4 1966171168
        %v1444 = vunpack.c.0.s8 %v1443
        %v1445 = vlaneseq
        %v1446 = vshrl.u32 %v1445, 7
        %v1447 = vsub.s32 %v1444, %v1446
        %v1448 = vrot.slane %v1434, %v1447
        %v1449 = vcombine.high %v1441, %v1441
        %v1450 = vcombine.high %v1448, %v1448
        %v1452 = vunpack.c.l.s4 1966171168
        %v1453 = vunpack.c.0.s8 %v1452
        %v1454 = vlaneseq
        %v1455 = vshrl.u32 %v1454, 7
        %v1456 = vsub.s32 %v1453, %v1455
        %v1457 = vrot.slane %v1441, %v1456
        %v1459 = vunpack.c.l.s4 1966171168
        %v1460 = vunpack.c.0.s8 %v1459
        %v1461 = vlaneseq
        %v1462 = vshrl.u32 %v1461, 7
        %v1463 = vsub.s32 %v1460, %v1462
        %v1464 = vrot.slane %v1448, %v1463
        %v1466 = vunpack.c.l.s4 1966171168
        %v1467 = vunpack.c.0.s8 %v1466
        %v1468 = vlaneseq
        %v1469 = vshrl.u32 %v1468, 7
        %v1470 = vsub.s32 %v1467, %v1469
        %v1471 = vrot.slane %v1449, %v1470
        %v1473 = vunpack.c.l.s4 1966171168
        %v1474 = vunpack.c.0.s8 %v1473
        %v1475 = vlaneseq
        %v1476 = vshrl.u32 %v1475, 7
        %v1477 = vsub.s32 %v1474, %v1476
        %v1478 = vrot.slane %v1450, %v1477
        %v1479 = vcombine.high %v1457, %v1457
        %v1480 = vcombine.high %v1464, %v1464
        %v1481 = vcombine.high %v1471, %v1471
        %v1482 = vcombine.high %v1478, %v1478
        %v1483 = vcombine.high %v943, %v943
        %v1485 = vunpack.c.l.s4 1966171168
        %v1486 = vunpack.c.0.s8 %v1485
        %v1487 = vlaneseq
        %v1488 = vshrl.u32 %v1487, 7
        %v1489 = vsub.s32 %v1486, %v1488
        %v1490 = vrot.slane %v943, %v1489
        %v1492 = vunpack.c.l.s4 1966171168
        %v1493 = vunpack.c.0.s8 %v1492
        %v1494 = vlaneseq
        %v1495 = vshrl.u32 %v1494, 7
        %v1496 = vsub.s32 %v1493, %v1495
        %v1497 = vrot.slane %v1483, %v1496
        %v1498 = vcombine.high %v1490, %v1490
        %v1499 = vcombine.high %v1497, %v1497
        %v1501 = vunpack.c.l.s4 1966171168
        %v1502 = vunpack.c.0.s8 %v1501
        %v1503 = vlaneseq
        %v1504 = vshrl.u32 %v1503, 7
        %v1505 = vsub.s32 %v1502, %v1504
        %v1506 = vrot.slane %v1490, %v1505
        %v1508 = vunpack.c.l.s4 1966171168
        %v1509 = vunpack.c.0.s8 %v1508
        %v1510 = vlaneseq
        %v1511 = vshrl.u32 %v1510, 7
        %v1512 = vsub.s32 %v1509, %v1511
        %v1513 = vrot.slane %v1497, %v1512
        %v1515 = vunpack.c.l.s4 1966171168
        %v1516 = vunpack.c.0.s8 %v1515
        %v1517 = vlaneseq
        %v1518 = vshrl.u32 %v1517, 7
        %v1519 = vsub.s32 %v1516, %v1518
        %v1520 = vrot.slane %v1498, %v1519
        %v1522 = vunpack.c.l.s4 1966171168
        %v1523 = vunpack.c.0.s8 %v1522
        %v1524 = vlaneseq
        %v1525 = vshrl.u32 %v1524, 7
        %v1526 = vsub.s32 %v1523, %v1525
        %v1527 = vrot.slane %v1499, %v1526
        %v1528 = vcombine.high %v1506, %v1506
        %v1529 = vcombine.high %v1513, %v1513
        %v1530 = vcombine.high %v1520, %v1520
        %v1531 = vcombine.high %v1527, %v1527
        %v1532 = vlaneseq
        %v1533 = vshrl.u32 %v1532, 7
        %v1534 = vsub.s32 0, %v1533
        %v1535 = vrot.slane %v1457, %v1534
        %v1536 = vlaneseq
        %v1537 = vshrl.u32 %v1536, 7
        %v1538 = vsub.s32 0, %v1537
        %v1539 = vrot.slane %v1471, %v1538
        %v1540 = vlaneseq
        %v1541 = vshrl.u32 %v1540, 7
        %v1542 = vsub.s32 0, %v1541
        %v1543 = vrot.slane %v1479, %v1542
        %v1544 = vlaneseq
        %v1545 = vshrl.u32 %v1544, 7
        %v1546 = vsub.s32 0, %v1545
        %v1547 = vrot.slane %v1481, %v1546
        %v1548 = vlaneseq
        %v1549 = vshrl.u32 %v1548, 7
        %v1550 = vsub.s32 0, %v1549
        %v1551 = vrot.slane %v1464, %v1550
        %v1552 = vlaneseq
        %v1553 = vshrl.u32 %v1552, 7
        %v1554 = vsub.s32 0, %v1553
        %v1555 = vrot.slane %v1478, %v1554
        %v1556 = vlaneseq
        %v1557 = vshrl.u32 %v1556, 7
        %v1558 = vsub.s32 0, %v1557
        %v1559 = vrot.slane %v1480, %v1558
        %v1560 = vlaneseq
        %v1561 = vshrl.u32 %v1560, 7
        %v1562 = vsub.s32 0, %v1561
        %v1563 = vrot.slane %v1482, %v1562
        %v1564 = vlaneseq
        %v1565 = vshrl.u32 %v1564, 7
        %v1566 = vsub.s32 0, %v1565
        %v1567 = vrot.slane %v1506, %v1566
        %v1568 = vlaneseq
        %v1569 = vshrl.u32 %v1568, 7
        %v1570 = vsub.s32 0, %v1569
        %v1571 = vrot.slane %v1520, %v1570
        %v1572 = vlaneseq
        %v1573 = vshrl.u32 %v1572, 7
        %v1574 = vsub.s32 0, %v1573
        %v1575 = vrot.slane %v1528, %v1574
        %v1576 = vlaneseq
        %v1577 = vshrl.u32 %v1576, 7
        %v1578 = vsub.s32 0, %v1577
        %v1579 = vrot.slane %v1530, %v1578
        %v1580 = vlaneseq
        %v1581 = vshrl.u32 %v1580, 7
        %v1582 = vsub.s32 0, %v1581
        %v1583 = vrot.slane %v1513, %v1582
        %v1584 = vlaneseq
        %v1585 = vshrl.u32 %v1584, 7
        %v1586 = vsub.s32 0, %v1585
        %v1587 = vrot.slane %v1527, %v1586
        %v1588 = vlaneseq
        %v1589 = vshrl.u32 %v1588, 7
        %v1590 = vsub.s32 0, %v1589
        %v1591 = vrot.slane %v1529, %v1590
        %v1592 = vlaneseq
        %v1593 = vshrl.u32 %v1592, 7
        %v1594 = vsub.s32 0, %v1593
        %v1595 = vrot.slane %v1531, %v1594
        %v1612 = vmul.f32 %v1262, %v1535
        %v1613 = vmul.f32 %v1266, %v1535
        %v1614 = vmul.f32 %v1273, %v1539
        %v1615 = vmul.f32 %v1277, %v1539
        %v1616 = vmul.f32 %v1284, %v1543
        %v1617 = vmul.f32 %v1288, %v1543
        %v1618 = vmul.f32 %v1295, %v1547
        %v1619 = vmul.f32 %v1299, %v1547
        %v1620 = vmul.f32 %v1306, %v1551
        %v1621 = vmul.f32 %v1310, %v1551
        %v1622 = vmul.f32 %v1317, %v1555
        %v1623 = vmul.f32 %v1321, %v1555
        %v1624 = vmul.f32 %v1328, %v1559
        %v1625 = vmul.f32 %v1332, %v1559
        %v1626 = vmul.f32 %v1339, %v1563
        %v1627 = vmul.f32 %v1343, %v1563
        %v1628 = vmul.f32 %v1350, %v1567
        %v1629 = vmul.f32 %v1354, %v1567
        %v1630 = vmul.f32 %v1361, %v1571
        %v1631 = vmul.f32 %v1365, %v1571
        %v1632 = vmul.f32 %v1372, %v1575
        %v1633 = vmul.f32 %v1376, %v1575
        %v1634 = vmul.f32 %v1383, %v1579
        %v1635 = vmul.f32 %v1387, %v1579
        %v1636 = vmul.f32 %v1394, %v1583
        %v1637 = vmul.f32 %v1398, %v1583
        %v1638 = vmul.f32 %v1405, %v1587
        %v1639 = vmul.f32 %v1409, %v1587
        %v1640 = vmul.f32 %v1416, %v1591
        %v1641 = vmul.f32 %v1420, %v1591
        %v1642 = vmul.f32 %v1427, %v1595
        %v1643 = vmul.f32 %v1431, %v1595
        %v1644 = vmul.f32 %v1193, %v936
        %v1645 = vmul.f32 %v1195, %v937
        %v1646 = vadd.f32 %v1644, %v1612
        %v1647 = vadd.f32 %v1645, %v1613
        %1649 = vset.pattern.permute.xlu0 0
        %1650 = vperm.xlu0 %1649, %v964
        %v1651 = vpop.permute.xlu0 %1650
        %1654 = vset.pattern.permute.xlu0 0
        %1655 = vperm.xlu0 %1654, %v965
        %v1656 = vpop.permute.xlu0 %1655
        %v1658 = vmul.f32 %v1651, %v1646
        %v1659 = vmul.f32 %v1656, %v1647
        %v1660 = vsel %vm549, %v1658, 0.0
        %v1661 = vsel %vm549, %v1659, 0.0
        %v1662 = vadd.f32 %v1660, %v1661
        %v1663 = vrot.slane %v1662, 4
        %v1664 = vadd.f32 %v1662, %v1663
        %v1665 = vrot.slane %v1664, 2
        %v1666 = vadd.f32 %v1664, %v1665
        %v1667 = vrot.slane %v1666, 1
        %v1668 = vadd.f32 %v1666, %v1667
        %vm1669 = vcmask 516096
        %1670 = vst.msk [vmem:[#allocation7] sm:$0x1] %vm1669, %v1668
        %v1671 = vmul.f32 %v1197, %v1646
        %v1672 = vmul.f32 %v1199, %v1647
        %v1673 = vadd.f32 %v1671, %v1614
        %v1674 = vadd.f32 %v1672, %v1615
        %1675 = vset.pattern.permute.xlu0 1
        %1676 = vperm.xlu0 %1675, %v964
        %v1677 = vpop.permute.xlu0 %1676
        %1679 = vset.pattern.permute.xlu0 1
        %1680 = vperm.xlu0 %1679, %v965
        %v1681 = vpop.permute.xlu0 %1680
        %v1683 = vmul.f32 %v1677, %v1673
        %v1684 = vmul.f32 %v1681, %v1674
        %v1685 = vsel %vm549, %v1683, 0.0
        %v1686 = vsel %vm549, %v1684, 0.0
        %v1687 = vadd.f32 %v1685, %v1686
        %v1688 = vrot.slane %v1687, 4
        %v1689 = vadd.f32 %v1687, %v1688
        %v1690 = vrot.slane %v1689, 2
        %v1691 = vadd.f32 %v1689, %v1690
        %v1692 = vrot.slane %v1691, 1
        %v1693 = vadd.f32 %v1691, %v1692
        %s1694 = sadd.s32 0, 1
        %s1695 = scalar_lea.vmem [#allocation7], %s1694
        %1696 = vst.msk [vmem:[%s1695] sm:$0x1] %vm1669, %v1693
        %v1697 = vmul.f32 %v1201, %v1673
        %v1698 = vmul.f32 %v1203, %v1674
        %v1699 = vadd.f32 %v1697, %v1616
        %v1700 = vadd.f32 %v1698, %v1617
        %1701 = vset.pattern.permute.xlu0 2
        %1702 = vperm.xlu0 %1701, %v964
        %v1703 = vpop.permute.xlu0 %1702
        %1705 = vset.pattern.permute.xlu0 2
        %1706 = vperm.xlu0 %1705, %v965
        %v1707 = vpop.permute.xlu0 %1706
        %v1709 = vmul.f32 %v1703, %v1699
        %v1710 = vmul.f32 %v1707, %v1700
        %v1711 = vsel %vm549, %v1709, 0.0
        %v1712 = vsel %vm549, %v1710, 0.0
        %v1713 = vadd.f32 %v1711, %v1712
        %v1714 = vrot.slane %v1713, 4
        %v1715 = vadd.f32 %v1713, %v1714
        %v1716 = vrot.slane %v1715, 2
        %v1717 = vadd.f32 %v1715, %v1716
        %v1718 = vrot.slane %v1717, 1
        %v1719 = vadd.f32 %v1717, %v1718
        %s1720 = sadd.s32 0, 2
        %s1721 = scalar_lea.vmem [#allocation7], %s1720
        %1722 = vst.msk [vmem:[%s1721] sm:$0x1] %vm1669, %v1719
        %v1723 = vmul.f32 %v1205, %v1699
        %v1724 = vmul.f32 %v1207, %v1700
        %v1725 = vadd.f32 %v1723, %v1618
        %v1726 = vadd.f32 %v1724, %v1619
        %1727 = vset.pattern.permute.xlu0 3
        %1728 = vperm.xlu0 %1727, %v964
        %v1729 = vpop.permute.xlu0 %1728
        %1731 = vset.pattern.permute.xlu0 3
        %1732 = vperm.xlu0 %1731, %v965
        %v1733 = vpop.permute.xlu0 %1732
        %v1735 = vmul.f32 %v1729, %v1725
        %v1736 = vmul.f32 %v1733, %v1726
        %v1737 = vsel %vm549, %v1735, 0.0
        %v1738 = vsel %vm549, %v1736, 0.0
        %v1739 = vadd.f32 %v1737, %v1738
        %v1740 = vrot.slane %v1739, 4
        %v1741 = vadd.f32 %v1739, %v1740
        %v1742 = vrot.slane %v1741, 2
        %v1743 = vadd.f32 %v1741, %v1742
        %v1744 = vrot.slane %v1743, 1
        %v1745 = vadd.f32 %v1743, %v1744
        %s1746 = sadd.s32 0, 3
        %s1747 = scalar_lea.vmem [#allocation7], %s1746
        %1748 = vst.msk [vmem:[%s1747] sm:$0x1] %vm1669, %v1745
        %v1749 = vmul.f32 %v1209, %v1725
        %v1750 = vmul.f32 %v1211, %v1726
        %v1751 = vadd.f32 %v1749, %v1620
        %v1752 = vadd.f32 %v1750, %v1621
        %1753 = vset.pattern.permute.xlu0 4
        %1754 = vperm.xlu0 %1753, %v964
        %v1755 = vpop.permute.xlu0 %1754
        %1757 = vset.pattern.permute.xlu0 4
        %1758 = vperm.xlu0 %1757, %v965
        %v1759 = vpop.permute.xlu0 %1758
        %v1761 = vmul.f32 %v1755, %v1751
        %v1762 = vmul.f32 %v1759, %v1752
        %v1763 = vsel %vm549, %v1761, 0.0
        %v1764 = vsel %vm549, %v1762, 0.0
        %v1765 = vadd.f32 %v1763, %v1764
        %v1766 = vrot.slane %v1765, 4
        %v1767 = vadd.f32 %v1765, %v1766
        %v1768 = vrot.slane %v1767, 2
        %v1769 = vadd.f32 %v1767, %v1768
        %v1770 = vrot.slane %v1769, 1
        %v1771 = vadd.f32 %v1769, %v1770
        %s1772 = sadd.s32 0, 4
        %s1773 = scalar_lea.vmem [#allocation7], %s1772
        %1774 = vst.msk [vmem:[%s1773] sm:$0x1] %vm1669, %v1771
        %v1775 = vmul.f32 %v1213, %v1751
        %v1776 = vmul.f32 %v1215, %v1752
        %v1777 = vadd.f32 %v1775, %v1622
        %v1778 = vadd.f32 %v1776, %v1623
        %1779 = vset.pattern.permute.xlu0 5
        %1780 = vperm.xlu0 %1779, %v964
        %v1781 = vpop.permute.xlu0 %1780
        %1783 = vset.pattern.permute.xlu0 5
        %1784 = vperm.xlu0 %1783, %v965
        %v1785 = vpop.permute.xlu0 %1784
        %v1787 = vmul.f32 %v1781, %v1777
        %v1788 = vmul.f32 %v1785, %v1778
        %v1789 = vsel %vm549, %v1787, 0.0
        %v1790 = vsel %vm549, %v1788, 0.0
        %v1791 = vadd.f32 %v1789, %v1790
        %v1792 = vrot.slane %v1791, 4
        %v1793 = vadd.f32 %v1791, %v1792
        %v1794 = vrot.slane %v1793, 2
        %v1795 = vadd.f32 %v1793, %v1794
        %v1796 = vrot.slane %v1795, 1
        %v1797 = vadd.f32 %v1795, %v1796
        %s1798 = sadd.s32 0, 5
        %s1799 = scalar_lea.vmem [#allocation7], %s1798
        %1800 = vst.msk [vmem:[%s1799] sm:$0x1] %vm1669, %v1797
        %v1801 = vmul.f32 %v1217, %v1777
        %v1802 = vmul.f32 %v1219, %v1778
        %v1803 = vadd.f32 %v1801, %v1624
        %v1804 = vadd.f32 %v1802, %v1625
        %1805 = vset.pattern.permute.xlu0 6
        %1806 = vperm.xlu0 %1805, %v964
        %v1807 = vpop.permute.xlu0 %1806
        %1809 = vset.pattern.permute.xlu0 6
        %1810 = vperm.xlu0 %1809, %v965
        %v1811 = vpop.permute.xlu0 %1810
        %v1813 = vmul.f32 %v1807, %v1803
        %v1814 = vmul.f32 %v1811, %v1804
        %v1815 = vsel %vm549, %v1813, 0.0
        %v1816 = vsel %vm549, %v1814, 0.0
        %v1817 = vadd.f32 %v1815, %v1816
        %v1818 = vrot.slane %v1817, 4
        %v1819 = vadd.f32 %v1817, %v1818
        %v1820 = vrot.slane %v1819, 2
        %v1821 = vadd.f32 %v1819, %v1820
        %v1822 = vrot.slane %v1821, 1
        %v1823 = vadd.f32 %v1821, %v1822
        %s1824 = sadd.s32 0, 6
        %s1825 = scalar_lea.vmem [#allocation7], %s1824
        %1826 = vst.msk [vmem:[%s1825] sm:$0x1] %vm1669, %v1823
        %v1827 = vmul.f32 %v1221, %v1803
        %v1828 = vmul.f32 %v1223, %v1804
        %v1829 = vadd.f32 %v1827, %v1626
        %v1830 = vadd.f32 %v1828, %v1627
        %1831 = vset.pattern.permute.xlu0 7
        %1832 = vperm.xlu0 %1831, %v964
        %v1833 = vpop.permute.xlu0 %1832
        %1835 = vset.pattern.permute.xlu0 7
        %1836 = vperm.xlu0 %1835, %v965
        %v1837 = vpop.permute.xlu0 %1836
        %v1839 = vmul.f32 %v1833, %v1829
        %v1840 = vmul.f32 %v1837, %v1830
        %v1841 = vsel %vm549, %v1839, 0.0
        %v1842 = vsel %vm549, %v1840, 0.0
        %v1843 = vadd.f32 %v1841, %v1842
        %v1844 = vrot.slane %v1843, 4
        %v1845 = vadd.f32 %v1843, %v1844
        %v1846 = vrot.slane %v1845, 2
        %v1847 = vadd.f32 %v1845, %v1846
        %v1848 = vrot.slane %v1847, 1
        %v1849 = vadd.f32 %v1847, %v1848
        %s1850 = sadd.s32 0, 7
        %s1851 = scalar_lea.vmem [#allocation7], %s1850
        %1852 = vst.msk [vmem:[%s1851] sm:$0x1] %vm1669, %v1849
        %v1853 = vmul.f32 %v1225, %v1829
        %v1854 = vmul.f32 %v1227, %v1830
        %v1855 = vadd.f32 %v1853, %v1628
        %v1856 = vadd.f32 %v1854, %v1629
        %1857 = vset.pattern.permute.xlu0 8
        %1858 = vperm.xlu0 %1857, %v964
        %v1859 = vpop.permute.xlu0 %1858
        %1861 = vset.pattern.permute.xlu0 8
        %1862 = vperm.xlu0 %1861, %v965
        %v1863 = vpop.permute.xlu0 %1862
        %v1865 = vmul.f32 %v1859, %v1855
        %v1866 = vmul.f32 %v1863, %v1856
        %v1867 = vsel %vm549, %v1865, 0.0
        %v1868 = vsel %vm549, %v1866, 0.0
        %v1869 = vadd.f32 %v1867, %v1868
        %v1870 = vrot.slane %v1869, 4
        %v1871 = vadd.f32 %v1869, %v1870
        %v1872 = vrot.slane %v1871, 2
        %v1873 = vadd.f32 %v1871, %v1872
        %v1874 = vrot.slane %v1873, 1
        %v1875 = vadd.f32 %v1873, %v1874
        %s1876 = sadd.s32 0, 8
        %s1877 = scalar_lea.vmem [#allocation7], %s1876
        %1878 = vst.msk [vmem:[%s1877] sm:$0x1] %vm1669, %v1875
        %v1879 = vmul.f32 %v1229, %v1855
        %v1880 = vmul.f32 %v1231, %v1856
        %v1881 = vadd.f32 %v1879, %v1630
        %v1882 = vadd.f32 %v1880, %v1631
        %1883 = vset.pattern.permute.xlu0 9
        %1884 = vperm.xlu0 %1883, %v964
        %v1885 = vpop.permute.xlu0 %1884
        %1887 = vset.pattern.permute.xlu0 9
        %1888 = vperm.xlu0 %1887, %v965
        %v1889 = vpop.permute.xlu0 %1888
        %v1891 = vmul.f32 %v1885, %v1881
        %v1892 = vmul.f32 %v1889, %v1882
        %v1893 = vsel %vm549, %v1891, 0.0
        %v1894 = vsel %vm549, %v1892, 0.0
        %v1895 = vadd.f32 %v1893, %v1894
        %v1896 = vrot.slane %v1895, 4
        %v1897 = vadd.f32 %v1895, %v1896
        %v1898 = vrot.slane %v1897, 2
        %v1899 = vadd.f32 %v1897, %v1898
        %v1900 = vrot.slane %v1899, 1
        %v1901 = vadd.f32 %v1899, %v1900
        %s1902 = sadd.s32 0, 9
        %s1903 = scalar_lea.vmem [#allocation7], %s1902
        %1904 = vst.msk [vmem:[%s1903] sm:$0x1] %vm1669, %v1901
        %v1905 = vmul.f32 %v1233, %v1881
        %v1906 = vmul.f32 %v1235, %v1882
        %v1907 = vadd.f32 %v1905, %v1632
        %v1908 = vadd.f32 %v1906, %v1633
        %1909 = vset.pattern.permute.xlu0 10
        %1910 = vperm.xlu0 %1909, %v964
        %v1911 = vpop.permute.xlu0 %1910
        %1913 = vset.pattern.permute.xlu0 10
        %1914 = vperm.xlu0 %1913, %v965
        %v1915 = vpop.permute.xlu0 %1914
        %v1917 = vmul.f32 %v1911, %v1907
        %v1918 = vmul.f32 %v1915, %v1908
        %v1919 = vsel %vm549, %v1917, 0.0
        %v1920 = vsel %vm549, %v1918, 0.0
        %v1921 = vadd.f32 %v1919, %v1920
        %v1922 = vrot.slane %v1921, 4
        %v1923 = vadd.f32 %v1921, %v1922
        %v1924 = vrot.slane %v1923, 2
        %v1925 = vadd.f32 %v1923, %v1924
        %v1926 = vrot.slane %v1925, 1
        %v1927 = vadd.f32 %v1925, %v1926
        %s1928 = sadd.s32 0, 10
        %s1929 = scalar_lea.vmem [#allocation7], %s1928
        %1930 = vst.msk [vmem:[%s1929] sm:$0x1] %vm1669, %v1927
        %v1931 = vmul.f32 %v1237, %v1907
        %v1932 = vmul.f32 %v1239, %v1908
        %v1933 = vadd.f32 %v1931, %v1634
        %v1934 = vadd.f32 %v1932, %v1635
        %1935 = vset.pattern.permute.xlu0 11
        %1936 = vperm.xlu0 %1935, %v964
        %v1937 = vpop.permute.xlu0 %1936
        %1939 = vset.pattern.permute.xlu0 11
        %1940 = vperm.xlu0 %1939, %v965
        %v1941 = vpop.permute.xlu0 %1940
        %v1943 = vmul.f32 %v1937, %v1933
        %v1944 = vmul.f32 %v1941, %v1934
        %v1945 = vsel %vm549, %v1943, 0.0
        %v1946 = vsel %vm549, %v1944, 0.0
        %v1947 = vadd.f32 %v1945, %v1946
        %v1948 = vrot.slane %v1947, 4
        %v1949 = vadd.f32 %v1947, %v1948
        %v1950 = vrot.slane %v1949, 2
        %v1951 = vadd.f32 %v1949, %v1950
        %v1952 = vrot.slane %v1951, 1
        %v1953 = vadd.f32 %v1951, %v1952
        %s1954 = sadd.s32 0, 11
        %s1955 = scalar_lea.vmem [#allocation7], %s1954
        %1956 = vst.msk [vmem:[%s1955] sm:$0x1] %vm1669, %v1953
        %v1957 = vmul.f32 %v1241, %v1933
        %v1958 = vmul.f32 %v1243, %v1934
        %v1959 = vadd.f32 %v1957, %v1636
        %v1960 = vadd.f32 %v1958, %v1637
        %1961 = vset.pattern.permute.xlu0 12
        %1962 = vperm.xlu0 %1961, %v964
        %v1963 = vpop.permute.xlu0 %1962
        %1965 = vset.pattern.permute.xlu0 12
        %1966 = vperm.xlu0 %1965, %v965
        %v1967 = vpop.permute.xlu0 %1966
        %v1969 = vmul.f32 %v1963, %v1959
        %v1970 = vmul.f32 %v1967, %v1960
        %v1971 = vsel %vm549, %v1969, 0.0
        %v1972 = vsel %vm549, %v1970, 0.0
        %v1973 = vadd.f32 %v1971, %v1972
        %v1974 = vrot.slane %v1973, 4
        %v1975 = vadd.f32 %v1973, %v1974
        %v1976 = vrot.slane %v1975, 2
        %v1977 = vadd.f32 %v1975, %v1976
        %v1978 = vrot.slane %v1977, 1
        %v1979 = vadd.f32 %v1977, %v1978
        %s1980 = sadd.s32 0, 12
        %s1981 = scalar_lea.vmem [#allocation7], %s1980
        %1982 = vst.msk [vmem:[%s1981] sm:$0x1] %vm1669, %v1979
        %v1983 = vmul.f32 %v1245, %v1959
        %v1984 = vmul.f32 %v1247, %v1960
        %v1985 = vadd.f32 %v1983, %v1638
        %v1986 = vadd.f32 %v1984, %v1639
        %1987 = vset.pattern.permute.xlu0 13
        %1988 = vperm.xlu0 %1987, %v964
        %v1989 = vpop.permute.xlu0 %1988
        %1991 = vset.pattern.permute.xlu0 13
        %1992 = vperm.xlu0 %1991, %v965
        %v1993 = vpop.permute.xlu0 %1992
        %v1995 = vmul.f32 %v1989, %v1985
        %v1996 = vmul.f32 %v1993, %v1986
        %v1997 = vsel %vm549, %v1995, 0.0
        %v1998 = vsel %vm549, %v1996, 0.0
        %v1999 = vadd.f32 %v1997, %v1998
        %v2000 = vrot.slane %v1999, 4
        %v2001 = vadd.f32 %v1999, %v2000
        %v2002 = vrot.slane %v2001, 2
        %v2003 = vadd.f32 %v2001, %v2002
        %v2004 = vrot.slane %v2003, 1
        %v2005 = vadd.f32 %v2003, %v2004
        %s2006 = sadd.s32 0, 13
        %s2007 = scalar_lea.vmem [#allocation7], %s2006
        %2008 = vst.msk [vmem:[%s2007] sm:$0x1] %vm1669, %v2005
        %v2009 = vmul.f32 %v1249, %v1985
        %v2010 = vmul.f32 %v1251, %v1986
        %v2011 = vadd.f32 %v2009, %v1640
        %v2012 = vadd.f32 %v2010, %v1641
        %2013 = vset.pattern.permute.xlu0 14
        %2014 = vperm.xlu0 %2013, %v964
        %v2015 = vpop.permute.xlu0 %2014
        %2017 = vset.pattern.permute.xlu0 14
        %2018 = vperm.xlu0 %2017, %v965
        %v2019 = vpop.permute.xlu0 %2018
        %v2021 = vmul.f32 %v2015, %v2011
        %v2022 = vmul.f32 %v2019, %v2012
        %v2023 = vsel %vm549, %v2021, 0.0
        %v2024 = vsel %vm549, %v2022, 0.0
        %v2025 = vadd.f32 %v2023, %v2024
        %v2026 = vrot.slane %v2025, 4
        %v2027 = vadd.f32 %v2025, %v2026
        %v2028 = vrot.slane %v2027, 2
        %v2029 = vadd.f32 %v2027, %v2028
        %v2030 = vrot.slane %v2029, 1
        %v2031 = vadd.f32 %v2029, %v2030
        %s2032 = sadd.s32 0, 14
        %s2033 = scalar_lea.vmem [#allocation7], %s2032
        %2034 = vst.msk [vmem:[%s2033] sm:$0x1] %vm1669, %v2031
        %v2035 = vmul.f32 %v1253, %v2011
        %v2036 = vmul.f32 %v1255, %v2012
        %v2037 = vadd.f32 %v2035, %v1642
        %v2038 = vadd.f32 %v2036, %v1643
        %2039 = vset.pattern.permute.xlu0 15
        %2040 = vperm.xlu0 %2039, %v964
        %v2041 = vpop.permute.xlu0 %2040
        %2043 = vset.pattern.permute.xlu0 15
        %2044 = vperm.xlu0 %2043, %v965
        %v2045 = vpop.permute.xlu0 %2044
        %v2047 = vmul.f32 %v2041, %v2037
        %v2048 = vmul.f32 %v2045, %v2038
        %v2049 = vsel %vm549, %v2047, 0.0
        %v2050 = vsel %vm549, %v2048, 0.0
        %v2051 = vadd.f32 %v2049, %v2050
        %v2052 = vrot.slane %v2051, 4
        %v2053 = vadd.f32 %v2051, %v2052
        %v2054 = vrot.slane %v2053, 2
        %v2055 = vadd.f32 %v2053, %v2054
        %v2056 = vrot.slane %v2055, 1
        %v2057 = vadd.f32 %v2055, %v2056
        %s2058 = sadd.s32 0, 15
        %s2059 = scalar_lea.vmem [#allocation7], %s2058
        %2060 = vst.msk [vmem:[%s2059] sm:$0x1] %vm1669, %v2057
        %2061 = vst.msk [vmem:[#allocation8] sm:$0xff] %vm549, %v2037
        %2062 = vst.msk [vmem:[#allocation8 + $0x8] sm:$0xff] %vm549, %v2038
        %v2063 = vld [vmem:[%s443] sm:$0xff]
        %v2064 = vld [vmem:[%s443 + $0x8] sm:$0xff]
        %v2065 = vld [vmem:[%s2] sm:$0xff]
        %v2066 = vld [vmem:[%s2 + $0x8] sm:$0xff]
        %v2067 = vld [vmem:[%s2 + $0x10] sm:$0xff]
        %v2068 = vld [vmem:[%s2 + $0x18] sm:$0xff]
        %v2070 = vsel %vm467, %v2063, 0
        %v2073 = vsel %vm467, %v2064, 0
        %2075 = vmatprep.subr.mxu0 0.0
        %2076 = vmatpush1.msra.mxu0 0.0
        %2077 = vmatprep.subr.mxu0 0.0
        %2078 = vmatpush1.msra.mxu0 0.0
        %2079 = vmatprep.subr.mxu0 0.0
        %2080 = vmatpush1.msra.mxu0 0.0
        %2081 = vmatprep.subr.mxu0 0.0
        %2082 = vmatpush1.msra.mxu0 0.0
        %2083 = vmatprep.subr.mxu0 0.0
        %2084 = vmatpush1.msra.mxu0 0.0
        %2085 = vmatprep.subr.mxu0 0.0
        %2086 = vmatpush1.msra.mxu0 0.0
        %2087 = vmatprep.subr.mxu0 0.0
        %2088 = vmatpush1.msra.mxu0 0.0
        %2089 = vmatprep.subr.mxu0 0.0
        %2090 = vmatpush1.msra.mxu0 0.0
        %2091 = vmatprep.subr.mxu0 0.0
        %2092 = vmatpush1.msra.mxu0 0.0
        %2093 = vmatprep.subr.mxu0 0.0
        %2094 = vmatpush1.msra.mxu0 0.0
        %2095 = vmatprep.subr.mxu0 0.0
        %2096 = vmatpush1.msra.mxu0 0.0
        %2097 = vmatprep.subr.mxu0 0.0
        %2098 = vmatpush1.msra.mxu0 0.0
        %2099 = vmatprep.subr.mxu0 0.0
        %2100 = vmatpush1.msra.mxu0 %v2068
        %2101 = vmatprep.subr.mxu0 0.0
        %2102 = vmatpush1.msra.mxu0 %v2067
        %2103 = vmatprep.subr.mxu0 0.0
        %2104 = vmatpush1.msra.mxu0 %v2066
        %2105 = vmatprep.subr.mxu0 0.0
        %2106 = vmatpush1.msra.mxu0 %v2065
        %2107 = vmatprep.subr.mxu0 0.0
        %2108 = vmatpush2.msra.mxu0 0.0
        %2109 = vmatprep.subr.mxu0 0.0
        %2110 = vmatpush2.msra.mxu0 0.0
        %2111 = vmatprep.subr.mxu0 0.0
        %2112 = vmatpush2.msra.mxu0 0.0
        %2113 = vmatprep.subr.mxu0 0.0
        %2114 = vmatpush2.msra.mxu0 0.0
        %2115 = vmatprep.subr.mxu0 0.0
        %2116 = vmatpush2.msra.mxu0 0.0
        %2117 = vmatprep.subr.mxu0 0.0
        %2118 = vmatpush2.msra.mxu0 0.0
        %2119 = vmatprep.subr.mxu0 0.0
        %2120 = vmatpush2.msra.mxu0 0.0
        %2121 = vmatprep.subr.mxu0 0.0
        %2122 = vmatpush2.msra.mxu0 0.0
        %2123 = vmatprep.subr.mxu0 0.0
        %2124 = vmatpush2.msra.mxu0 0.0
        %2125 = vmatprep.subr.mxu0 0.0
        %2126 = vmatpush2.msra.mxu0 0.0
        %2127 = vmatprep.subr.mxu0 0.0
        %2128 = vmatpush2.msra.mxu0 0.0
        %2129 = vmatprep.subr.mxu0 0.0
        %2130 = vmatpush2.msra.mxu0 0.0
        %2131 = vmatprep.subr.mxu0 0.0
        %2132 = vmatpush2.msra.mxu0 0.0
        %2133 = vmatprep.subr.mxu0 0.0
        %2134 = vmatpush2.msra.mxu0 0.0
        %2135 = vmatprep.subr.mxu0 0.0
        %2136 = vmatpush2.msra.mxu0 0.0
        %2137 = vmatprep.subr.mxu0 0.0
        %2138 = vmatpush2.msra.mxu0 0.0
        %2139 = vmatprep.mubr.f32.mxu0 0.0
        %2140 = vmatmul.mubr.f32.gmra.mxu0 %v2070
        %v2141 = vpop.f32.mrf.mxu0
        %v2142 = vadd.f32 0.0, %v2141
        %v2143 = vpop.f32.mrf.mxu0
        %2144 = vmatprep.mubr.f32.mxu0 0.0
        %2145 = vmatmul.mubr.f32.gmra.mxu0 %v2073
        %v2146 = vpop.f32.mrf.mxu0
        %v2147 = vadd.f32 0.0, %v2146
        %v2148 = vpop.f32.mrf.mxu0
        %2149 = vdwg.mxu0
        %v2150 = vld [vmem:[#allocation7] sm:$0xff]
        %v2151 = vld [vmem:[#allocation7 + $0x8] sm:$0xff]
        %v2152 = vld [vmem:[%s9] sm:$0x1]
        %v2153 = vld [vmem:[#allocation4] sm:$0xff]
        %v2154 = vld [vmem:[#allocation4 + $0x8] sm:$0xff]
        %v2156 = vlaneseq
        %v2157 = vshrl.u32 %v2156, 7
        %v2158 = vsub.s32 0, %v2157
        %v2159 = vrot.slane %v2152, %v2158
        %v2161 = vmul.f32 %v2159, %v2153
        %v2162 = vmul.f32 %v2159, %v2154
        %v2163 = vadd.f32 %v2150, %v2161
        %v2164 = vadd.f32 %v2151, %v2162
        %v2165 = vxor.u32 %v2142, 2147483648
        %v2166 = vxor.u32 %v2147, 2147483648
        %v2167 = vmul.f32 %v2165, 1.442695
        %v2168 = vpow.pop %v2167
        %v2169 = vmul.f32 %v2166, 1.442695
        %v2170 = vpow.pop %v2169
        %v2171 = vadd.f32 %v2168, 1.0
        %v2172 = vadd.f32 %v2170, 1.0
        %v2173 = vrcp.pop %v2171
        %v2174 = vmul.f32 1.0, %v2173
        %v2175 = vrcp.pop %v2172
        %v2176 = vmul.f32 1.0, %v2175
        %v2177 = vmul.f32 %v2142, %v2174
        %v2178 = vmul.f32 %v2147, %v2176
        %v2179 = vmul.f32 %v2163, %v2177
        %v2180 = vmul.f32 %v2164, %v2178
        %v2181 = vld [vmem:[%s10] sm:$0xff]
        %v2182 = vld [vmem:[%s10 + $0x8] sm:$0xff]
        %v2183 = vld [vmem:[%s10 + $0x10] sm:$0xff]
        %v2184 = vld [vmem:[%s10 + $0x18] sm:$0xff]
        %v2185 = vld [vmem:[%s10 + $0x20] sm:$0xff]
        %v2186 = vld [vmem:[%s10 + $0x28] sm:$0xff]
        %v2187 = vld [vmem:[%s10 + $0x30] sm:$0xff]
        %v2188 = vld [vmem:[%s10 + $0x38] sm:$0xff]
        %v2190 = vsel %vm549, %v2179, 0
        %v2193 = vsel %vm549, %v2180, 0
        %2195 = vmatprep.subr.mxu0 0.0
        %2196 = vmatpush1.msra.mxu0 0.0
        %2197 = vmatprep.subr.mxu0 0.0
        %2198 = vmatpush1.msra.mxu0 0.0
        %2199 = vmatprep.subr.mxu0 0.0
        %2200 = vmatpush1.msra.mxu0 0.0
        %2201 = vmatprep.subr.mxu0 0.0
        %2202 = vmatpush1.msra.mxu0 0.0
        %2203 = vmatprep.subr.mxu0 0.0
        %2204 = vmatpush1.msra.mxu0 0.0
        %2205 = vmatprep.subr.mxu0 0.0
        %2206 = vmatpush1.msra.mxu0 0.0
        %2207 = vmatprep.subr.mxu0 0.0
        %2208 = vmatpush1.msra.mxu0 0.0
        %2209 = vmatprep.subr.mxu0 0.0
        %2210 = vmatpush1.msra.mxu0 0.0
        %2211 = vmatprep.subr.mxu0 0.0
        %2212 = vmatpush1.msra.mxu0 %v2188
        %2213 = vmatprep.subr.mxu0 0.0
        %2214 = vmatpush1.msra.mxu0 %v2187
        %2215 = vmatprep.subr.mxu0 0.0
        %2216 = vmatpush1.msra.mxu0 %v2186
        %2217 = vmatprep.subr.mxu0 0.0
        %2218 = vmatpush1.msra.mxu0 %v2185
        %2219 = vmatprep.subr.mxu0 0.0
        %2220 = vmatpush1.msra.mxu0 %v2184
        %2221 = vmatprep.subr.mxu0 0.0
        %2222 = vmatpush1.msra.mxu0 %v2183
        %2223 = vmatprep.subr.mxu0 0.0
        %2224 = vmatpush1.msra.mxu0 %v2182
        %2225 = vmatprep.subr.mxu0 0.0
        %2226 = vmatpush1.msra.mxu0 %v2181
        %2227 = vmatprep.subr.mxu0 0.0
        %2228 = vmatpush2.msra.mxu0 0.0
        %2229 = vmatprep.subr.mxu0 0.0
        %2230 = vmatpush2.msra.mxu0 0.0
        %2231 = vmatprep.subr.mxu0 0.0
        %2232 = vmatpush2.msra.mxu0 0.0
        %2233 = vmatprep.subr.mxu0 0.0
        %2234 = vmatpush2.msra.mxu0 0.0
        %2235 = vmatprep.subr.mxu0 0.0
        %2236 = vmatpush2.msra.mxu0 0.0
        %2237 = vmatprep.subr.mxu0 0.0
        %2238 = vmatpush2.msra.mxu0 0.0
        %2239 = vmatprep.subr.mxu0 0.0
        %2240 = vmatpush2.msra.mxu0 0.0
        %2241 = vmatprep.subr.mxu0 0.0
        %2242 = vmatpush2.msra.mxu0 0.0
        %2243 = vmatprep.subr.mxu0 0.0
        %2244 = vmatpush2.msra.mxu0 0.0
        %2245 = vmatprep.subr.mxu0 0.0
        %2246 = vmatpush2.msra.mxu0 0.0
        %2247 = vmatprep.subr.mxu0 0.0
        %2248 = vmatpush2.msra.mxu0 0.0
        %2249 = vmatprep.subr.mxu0 0.0
        %2250 = vmatpush2.msra.mxu0 0.0
        %2251 = vmatprep.subr.mxu0 0.0
        %2252 = vmatpush2.msra.mxu0 0.0
        %2253 = vmatprep.subr.mxu0 0.0
        %2254 = vmatpush2.msra.mxu0 0.0
        %2255 = vmatprep.subr.mxu0 0.0
        %2256 = vmatpush2.msra.mxu0 0.0
        %2257 = vmatprep.subr.mxu0 0.0
        %2258 = vmatpush2.msra.mxu0 0.0
        %2259 = vmatprep.mubr.f32.mxu0 0.0
        %2260 = vmatmul.mubr.f32.gmra.mxu0 %v2190
        %v2261 = vpop.f32.mrf.mxu0
        %v2262 = vadd.f32 0.0, %v2261
        %v2263 = vpop.f32.mrf.mxu0
        %2264 = vmatprep.mubr.f32.mxu0 0.0
        %2265 = vmatmul.mubr.f32.gmra.mxu0 %v2193
        %v2266 = vpop.f32.mrf.mxu0
        %v2267 = vadd.f32 0.0, %v2266
        %v2268 = vpop.f32.mrf.mxu0
        %2269 = vdwg.mxu0
        %2270 = vst.msk [vmem:[%s434] sm:$0xff] %vm467, %v2262
        %2271 = vst.msk [vmem:[%s434 + $0x8] sm:$0xff] %vm467, %v2267
        %s2272 = sand.u32 %s287, 1
        %s2273 = scalar_lea.sflag [#allocation11], %s2272
        %s2274 = sand.u32 %s287, 1
        %s2275 = smul.addr %s2274, 16
        %s2276 = scalar_lea.vmem [#allocation14], %s2275
        // Predicated region
        $region81: #{tpu_custom_call.1} parent=63 // pred_check
          %p2277 = pneg %p297
        $region82: #{tpu_custom_call.1} parent=63 // pred_check_branch
          %2279 = sbr.rel (%p2277) target = $region84
        $region83: #{tpu_custom_call.1} parent=63 // pred_region
          %s2280 = smul.u32 2, %s32
          %s2282 = ssub.s32 256, 256
          %2283 = vsyncadd %s2273, %s2282
          %s2284 = smul.addr %s31, 2
          %s2285 = sadd.s32 %s2280, %s2284
          %s2286 = smul.addr %s2285, 128
          %s2287 = scalar_lea.hbm %s11, %s2286
          %s2288 = sshll.u32 %s2276, 4
          %s2289 = int_to_ptr.vmem [resolvable:$true] %s2288
          %2294 = dma.vmem_to_hbm [thread:$0]  %s2289, 256, %s2287, %s2273, 128, 128, 8
        $region84: #{tpu_custom_call.1} parent=63 // pred_fallthru
          _
      $region64: #{tpu_custom_call.1} parent=5 // pred_fallthru
        _
      %p2295 = scmp.le.s32.totalorder 2, %s22
      // Predicated region
      $region85: #{tpu_custom_call.1} parent=5 // pred_check
        %p2296 = pneg %p2295
      $region86: #{tpu_custom_call.1} parent=5 // pred_check_branch
        %2298 = sbr.rel (%p2296) target = $region88
      $region87: #{tpu_custom_call.1} parent=5 // pred_region
        %s2299 = ssub.s32 %s22, 2
        // Predicated region
        $region89: #{tpu_custom_call.1} parent=87 // pred_check
          %p2300 = pneg %p303
        $region90: #{tpu_custom_call.1} parent=87 // pred_check_branch
          %2302 = sbr.rel (%p2300) target = $region92
        $region91: #{tpu_custom_call.1} parent=87 // pred_region
          %s2303 = sand.u32 %s288, 1
          %s2304 = scalar_lea.sflag [#allocation11], %s2303
          %s2305 = sand.u32 %s288, 1
          %s2306 = smul.addr %s2305, 16
          %s2307 = scalar_lea.vmem [#allocation14], %s2306
          %2308 = dma.done %s2304, 256
        $region92: #{tpu_custom_call.1} parent=87 // pred_fallthru
          _
      $region88: #{tpu_custom_call.1} parent=5 // pred_fallthru
        _
    $region6: #{tpu_custom_call.1} parent=1 // loop_footer
      %s26 = sadd.s32 1, %s22
    $region7: #{tpu_custom_call.1} parent=1 // loop_footer_branch
      %21 = sbr.rel target = $region3
    $region8: #{tpu_custom_call.1} parent=1 // loop_exit
      _
    %2309 = vsyncpa [#allocation10], 1
    %s2310 = scalar_lea.sflag [#allocation10], 1
    %2311 = vsyncpa %s2310, 1
    %2312 = vsyncpa [#allocation13], 1
    %2313 = vsyncpa [#allocation11], 1
    %s2314 = scalar_lea.sflag [#allocation11], 1
    %2315 = vsyncpa %s2314, 1

</llo_original>
